<compile_context>
chip_gen: v7x
topology: tpu7x:2x2x1
jax: 0.10.0
libtpu: 0.0.40
codegen_flags: <defaults>
</compile_context>

<pallas_src>
import functools

import jax
import jax.numpy as jnp
import numpy as np
from jax.experimental import pallas as pl
from jax.experimental.pallas import tpu as pltpu

KH, KW = 3, 3


def conv_tanh_kernel(x_ref, w_ref, b_ref, o_ref, *, img_w):
    """Fused 3x3 valid conv + bias + tanh on a flattened-spatial layout.

    x_ref : (N, Cin, H*W + tail)  VMEM f32  (flattened image, zero-padded tail)
    w_ref : (Cout*Cin*KH*KW,)     SMEM f32  (flattened PyTorch OIHW weight)
    b_ref : (Cout,)               SMEM f32
    o_ref : (N, Cout, H*W)        VMEM f32  (lane-dense; cropped to (Ho, Wo) outside)
    """
    N, Cin, _ = x_ref.shape
    _, Cout, HW = o_ref.shape

    # Hoisted tap planes: a 2-D shift of (kh, kw) is a shift of kh*W + kw on the
    # flattened axis; positions that read across a row boundary or into the
    # zero-padded tail land only in output entries the wrapper crops away.
    # One (N, H*W) load per (tap, channel): 36 loads total, reused by every
    # output channel below (no per-co relayout work).
    planes = []
    for kh in range(KH):
        for kw in range(KW):
            d = kh * img_w + kw
            for ci in range(Cin):
                planes.append(x_ref[:, ci, d:d + HW])   # (N, H*W)

    for co in range(Cout):
        # One accumulator per kh -> 3 independent VALU chains per output channel.
        parts = []
        for kh in range(KH):
            acc = None
            for kw in range(KW):
                for ci in range(Cin):
                    wv = w_ref[((co * Cin + ci) * KH + kh) * KW + kw]
                    term = planes[(kh * KW + kw) * Cin + ci] * wv
                    acc = term if acc is None else acc + term
            parts.append(acc)
        pre = (parts[0] + parts[1]) + (parts[2] + b_ref[co])
        o_ref[:, co, :] = jnp.tanh(pre)   # full-width (H*W-lane) store


def conv2d_tanh(x, weight, bias):
    """x: (N, Cin, H, W) f32; weight: (Cout, Cin, 3, 3) f32; bias: (Cout,) f32."""
    N, Cin, H, W = x.shape
    Cout = weight.shape[0]
    Ho, Wo = H - (KH - 1), W - (KW - 1)
    HW = H * W
    tail = (KH - 1) * W + (KW - 1)   # largest flat tap offset (2*W + 2)

    # Wrapper-side layout plumbing: flatten the spatial dims so the lane axis is
    # H*W (multiple of 128 here) and zero-pad the tail so every tap slice in the
    # kernel has full width H*W.
    x_flat = jnp.pad(x.reshape(N, Cin, HW).astype(jnp.float32),
                     ((0, 0), (0, 0), (0, tail)))
    w_flat = weight.reshape(-1).astype(jnp.float32)
    b_flat = bias.astype(jnp.float32)

    out_flat = pl.pallas_call(
        functools.partial(conv_tanh_kernel, img_w=W),
        out_shape=jax.ShapeDtypeStruct((N, Cout, HW), jnp.float32),
        in_specs=[
            pl.BlockSpec(memory_space=pltpu.MemorySpace.VMEM),   # x (flattened)
            pl.BlockSpec(memory_space=pltpu.MemorySpace.SMEM),   # flattened weights
            pl.BlockSpec(memory_space=pltpu.MemorySpace.SMEM),   # bias
        ],
        out_specs=pl.BlockSpec(memory_space=pltpu.MemorySpace.VMEM),
        # No grid: single ~10 KiB block, launch-overhead bound.  If N/H/W grow,
        # add a grid over N with dimension_semantics=("parallel",) to shard
        # across TensorCores (v7x) and keep tiles under the 64 MiB/TC budget,
        # and switch the reduction to im2col + one MXU matmul.
    )(x_flat, w_flat, b_flat)

    # Crop the lane-dense flat output back to the valid NCHW window.
    return out_flat.reshape(N, Cout, H, W)[:, :, :Ho, :Wo]


def reference(x, weight, bias):
    out = jax.lax.conv_general_dilated(
        x, weight, window_strides=(1, 1), padding="VALID",
        dimension_numbers=("NCHW", "OIHW", "NCHW"))
    return jnp.tanh(out + bias[None, :, None, None])


if __name__ == "__main__":
    key = jax.random.PRNGKey(0)
    kx, kw, kb = jax.random.split(key, 3)

    # Small shapes consistent with the module (Conv2d(4, 4, 3)): N=2, C=4, H=W=16.
    x = jax.random.uniform(kx, (2, 4, 16, 16), dtype=jnp.float32)

    # PyTorch Conv2d default init scheme: U(-k, k), k = 1/sqrt(fan_in).
    fan_in = 4 * KH * KW
    bound = 1.0 / np.sqrt(fan_in)
    weight = jax.random.uniform(kw, (4, 4, KH, KW), minval=-bound, maxval=bound,
                                dtype=jnp.float32)
    bias = jax.random.uniform(kb, (4,), minval=-bound, maxval=bound,
                              dtype=jnp.float32)

    out = jax.block_until_ready(conv2d_tanh(x, weight, bias))
    ref = jax.block_until_ready(reference(x, weight, bias))

    if not np.allclose(np.asarray(out), np.asarray(ref), atol=1e-5, rtol=1e-5):
        raise AssertionError("Pallas conv+tanh kernel does not match reference")
    print("KERNEL_OK")
</pallas_src>

<mosaic_0001>
module attributes {stable_mosaic.version = 11 : i64} {
  func.func @conv_tanh_kernel(%arg0: memref<2x4x290xf32, #tpu.memory_space<vmem>>, %arg1: memref<144xf32, #tpu.memory_space<smem>>, %arg2: memref<4xf32, #tpu.memory_space<smem>>, %arg3: memref<2x4x256xf32, #tpu.memory_space<vmem>>) attributes {dimension_semantics = [], scalar_prefetch = 0 : i64, scratch_operands = 0 : i64, tpu.core_type = #tpu.core_type<tc>} {
    %c0 = arith.constant 0 : index
    %c0_0 = arith.constant 0 : index
    %c0_1 = arith.constant 0 : index
    %0 = vector.load %arg0[%c0, %c0_0, %c0_1] : memref<2x4x290xf32, #tpu.memory_space<vmem>>, vector<2x1x256xf32>
    %1 = vector.shape_cast %0 : vector<2x1x256xf32> to vector<2x256xf32>
    %c0_2 = arith.constant 0 : index
    %c1 = arith.constant 1 : index
    %c0_3 = arith.constant 0 : index
    %2 = vector.load %arg0[%c0_2, %c1, %c0_3] : memref<2x4x290xf32, #tpu.memory_space<vmem>>, vector<2x1x256xf32>
    %3 = vector.shape_cast %2 : vector<2x1x256xf32> to vector<2x256xf32>
    %c0_4 = arith.constant 0 : index
    %c2 = arith.constant 2 : index
    %c0_5 = arith.constant 0 : index
    %4 = vector.load %arg0[%c0_4, %c2, %c0_5] : memref<2x4x290xf32, #tpu.memory_space<vmem>>, vector<2x1x256xf32>
    %5 = vector.shape_cast %4 : vector<2x1x256xf32> to vector<2x256xf32>
    %c0_6 = arith.constant 0 : index
    %c3 = arith.constant 3 : index
    %c0_7 = arith.constant 0 : index
    %6 = vector.load %arg0[%c0_6, %c3, %c0_7] : memref<2x4x290xf32, #tpu.memory_space<vmem>>, vector<2x1x256xf32>
    %7 = vector.shape_cast %6 : vector<2x1x256xf32> to vector<2x256xf32>
    %c0_8 = arith.constant 0 : index
    %c0_9 = arith.constant 0 : index
    %c1_10 = arith.constant 1 : index
    %8 = vector.load %arg0[%c0_8, %c0_9, %c1_10] : memref<2x4x290xf32, #tpu.memory_space<vmem>>, vector<2x1x256xf32>
    %9 = vector.shape_cast %8 : vector<2x1x256xf32> to vector<2x256xf32>
    %c0_11 = arith.constant 0 : index
    %c1_12 = arith.constant 1 : index
    %c1_13 = arith.constant 1 : index
    %10 = vector.load %arg0[%c0_11, %c1_12, %c1_13] : memref<2x4x290xf32, #tpu.memory_space<vmem>>, vector<2x1x256xf32>
    %11 = vector.shape_cast %10 : vector<2x1x256xf32> to vector<2x256xf32>
    %c0_14 = arith.constant 0 : index
    %c2_15 = arith.constant 2 : index
    %c1_16 = arith.constant 1 : index
    %12 = vector.load %arg0[%c0_14, %c2_15, %c1_16] : memref<2x4x290xf32, #tpu.memory_space<vmem>>, vector<2x1x256xf32>
    %13 = vector.shape_cast %12 : vector<2x1x256xf32> to vector<2x256xf32>
    %c0_17 = arith.constant 0 : index
    %c3_18 = arith.constant 3 : index
    %c1_19 = arith.constant 1 : index
    %14 = vector.load %arg0[%c0_17, %c3_18, %c1_19] : memref<2x4x290xf32, #tpu.memory_space<vmem>>, vector<2x1x256xf32>
    %15 = vector.shape_cast %14 : vector<2x1x256xf32> to vector<2x256xf32>
    %c0_20 = arith.constant 0 : index
    %c0_21 = arith.constant 0 : index
    %c2_22 = arith.constant 2 : index
    %16 = vector.load %arg0[%c0_20, %c0_21, %c2_22] : memref<2x4x290xf32, #tpu.memory_space<vmem>>, vector<2x1x256xf32>
    %17 = vector.shape_cast %16 : vector<2x1x256xf32> to vector<2x256xf32>
    %c0_23 = arith.constant 0 : index
    %c1_24 = arith.constant 1 : index
    %c2_25 = arith.constant 2 : index
    %18 = vector.load %arg0[%c0_23, %c1_24, %c2_25] : memref<2x4x290xf32, #tpu.memory_space<vmem>>, vector<2x1x256xf32>
    %19 = vector.shape_cast %18 : vector<2x1x256xf32> to vector<2x256xf32>
    %c0_26 = arith.constant 0 : index
    %c2_27 = arith.constant 2 : index
    %c2_28 = arith.constant 2 : index
    %20 = vector.load %arg0[%c0_26, %c2_27, %c2_28] : memref<2x4x290xf32, #tpu.memory_space<vmem>>, vector<2x1x256xf32>
    %21 = vector.shape_cast %20 : vector<2x1x256xf32> to vector<2x256xf32>
    %c0_29 = arith.constant 0 : index
    %c3_30 = arith.constant 3 : index
    %c2_31 = arith.constant 2 : index
    %22 = vector.load %arg0[%c0_29, %c3_30, %c2_31] : memref<2x4x290xf32, #tpu.memory_space<vmem>>, vector<2x1x256xf32>
    %23 = vector.shape_cast %22 : vector<2x1x256xf32> to vector<2x256xf32>
    %c0_32 = arith.constant 0 : index
    %c0_33 = arith.constant 0 : index
    %c16 = arith.constant 16 : index
    %24 = vector.load %arg0[%c0_32, %c0_33, %c16] : memref<2x4x290xf32, #tpu.memory_space<vmem>>, vector<2x1x256xf32>
    %25 = vector.shape_cast %24 : vector<2x1x256xf32> to vector<2x256xf32>
    %c0_34 = arith.constant 0 : index
    %c1_35 = arith.constant 1 : index
    %c16_36 = arith.constant 16 : index
    %26 = vector.load %arg0[%c0_34, %c1_35, %c16_36] : memref<2x4x290xf32, #tpu.memory_space<vmem>>, vector<2x1x256xf32>
    %27 = vector.shape_cast %26 : vector<2x1x256xf32> to vector<2x256xf32>
    %c0_37 = arith.constant 0 : index
    %c2_38 = arith.constant 2 : index
    %c16_39 = arith.constant 16 : index
    %28 = vector.load %arg0[%c0_37, %c2_38, %c16_39] : memref<2x4x290xf32, #tpu.memory_space<vmem>>, vector<2x1x256xf32>
    %29 = vector.shape_cast %28 : vector<2x1x256xf32> to vector<2x256xf32>
    %c0_40 = arith.constant 0 : index
    %c3_41 = arith.constant 3 : index
    %c16_42 = arith.constant 16 : index
    %30 = vector.load %arg0[%c0_40, %c3_41, %c16_42] : memref<2x4x290xf32, #tpu.memory_space<vmem>>, vector<2x1x256xf32>
    %31 = vector.shape_cast %30 : vector<2x1x256xf32> to vector<2x256xf32>
    %c0_43 = arith.constant 0 : index
    %c0_44 = arith.constant 0 : index
    %c17 = arith.constant 17 : index
    %32 = vector.load %arg0[%c0_43, %c0_44, %c17] : memref<2x4x290xf32, #tpu.memory_space<vmem>>, vector<2x1x256xf32>
    %33 = vector.shape_cast %32 : vector<2x1x256xf32> to vector<2x256xf32>
    %c0_45 = arith.constant 0 : index
    %c1_46 = arith.constant 1 : index
    %c17_47 = arith.constant 17 : index
    %34 = vector.load %arg0[%c0_45, %c1_46, %c17_47] : memref<2x4x290xf32, #tpu.memory_space<vmem>>, vector<2x1x256xf32>
    %35 = vector.shape_cast %34 : vector<2x1x256xf32> to vector<2x256xf32>
    %c0_48 = arith.constant 0 : index
    %c2_49 = arith.constant 2 : index
    %c17_50 = arith.constant 17 : index
    %36 = vector.load %arg0[%c0_48, %c2_49, %c17_50] : memref<2x4x290xf32, #tpu.memory_space<vmem>>, vector<2x1x256xf32>
    %37 = vector.shape_cast %36 : vector<2x1x256xf32> to vector<2x256xf32>
    %c0_51 = arith.constant 0 : index
    %c3_52 = arith.constant 3 : index
    %c17_53 = arith.constant 17 : index
    %38 = vector.load %arg0[%c0_51, %c3_52, %c17_53] : memref<2x4x290xf32, #tpu.memory_space<vmem>>, vector<2x1x256xf32>
    %39 = vector.shape_cast %38 : vector<2x1x256xf32> to vector<2x256xf32>
    %c0_54 = arith.constant 0 : index
    %c0_55 = arith.constant 0 : index
    %c18 = arith.constant 18 : index
    %40 = vector.load %arg0[%c0_54, %c0_55, %c18] : memref<2x4x290xf32, #tpu.memory_space<vmem>>, vector<2x1x256xf32>
    %41 = vector.shape_cast %40 : vector<2x1x256xf32> to vector<2x256xf32>
    %c0_56 = arith.constant 0 : index
    %c1_57 = arith.constant 1 : index
    %c18_58 = arith.constant 18 : index
    %42 = vector.load %arg0[%c0_56, %c1_57, %c18_58] : memref<2x4x290xf32, #tpu.memory_space<vmem>>, vector<2x1x256xf32>
    %43 = vector.shape_cast %42 : vector<2x1x256xf32> to vector<2x256xf32>
    %c0_59 = arith.constant 0 : index
    %c2_60 = arith.constant 2 : index
    %c18_61 = arith.constant 18 : index
    %44 = vector.load %arg0[%c0_59, %c2_60, %c18_61] : memref<2x4x290xf32, #tpu.memory_space<vmem>>, vector<2x1x256xf32>
    %45 = vector.shape_cast %44 : vector<2x1x256xf32> to vector<2x256xf32>
    %c0_62 = arith.constant 0 : index
    %c3_63 = arith.constant 3 : index
    %c18_64 = arith.constant 18 : index
    %46 = vector.load %arg0[%c0_62, %c3_63, %c18_64] : memref<2x4x290xf32, #tpu.memory_space<vmem>>, vector<2x1x256xf32>
    %47 = vector.shape_cast %46 : vector<2x1x256xf32> to vector<2x256xf32>
    %c0_65 = arith.constant 0 : index
    %c0_66 = arith.constant 0 : index
    %c32 = arith.constant 32 : index
    %48 = vector.load %arg0[%c0_65, %c0_66, %c32] : memref<2x4x290xf32, #tpu.memory_space<vmem>>, vector<2x1x256xf32>
    %49 = vector.shape_cast %48 : vector<2x1x256xf32> to vector<2x256xf32>
    %c0_67 = arith.constant 0 : index
    %c1_68 = arith.constant 1 : index
    %c32_69 = arith.constant 32 : index
    %50 = vector.load %arg0[%c0_67, %c1_68, %c32_69] : memref<2x4x290xf32, #tpu.memory_space<vmem>>, vector<2x1x256xf32>
    %51 = vector.shape_cast %50 : vector<2x1x256xf32> to vector<2x256xf32>
    %c0_70 = arith.constant 0 : index
    %c2_71 = arith.constant 2 : index
    %c32_72 = arith.constant 32 : index
    %52 = vector.load %arg0[%c0_70, %c2_71, %c32_72] : memref<2x4x290xf32, #tpu.memory_space<vmem>>, vector<2x1x256xf32>
    %53 = vector.shape_cast %52 : vector<2x1x256xf32> to vector<2x256xf32>
    %c0_73 = arith.constant 0 : index
    %c3_74 = arith.constant 3 : index
    %c32_75 = arith.constant 32 : index
    %54 = vector.load %arg0[%c0_73, %c3_74, %c32_75] : memref<2x4x290xf32, #tpu.memory_space<vmem>>, vector<2x1x256xf32>
    %55 = vector.shape_cast %54 : vector<2x1x256xf32> to vector<2x256xf32>
    %c0_76 = arith.constant 0 : index
    %c0_77 = arith.constant 0 : index
    %c33 = arith.constant 33 : index
    %56 = vector.load %arg0[%c0_76, %c0_77, %c33] : memref<2x4x290xf32, #tpu.memory_space<vmem>>, vector<2x1x256xf32>
    %57 = vector.shape_cast %56 : vector<2x1x256xf32> to vector<2x256xf32>
    %c0_78 = arith.constant 0 : index
    %c1_79 = arith.constant 1 : index
    %c33_80 = arith.constant 33 : index
    %58 = vector.load %arg0[%c0_78, %c1_79, %c33_80] : memref<2x4x290xf32, #tpu.memory_space<vmem>>, vector<2x1x256xf32>
    %59 = vector.shape_cast %58 : vector<2x1x256xf32> to vector<2x256xf32>
    %c0_81 = arith.constant 0 : index
    %c2_82 = arith.constant 2 : index
    %c33_83 = arith.constant 33 : index
    %60 = vector.load %arg0[%c0_81, %c2_82, %c33_83] : memref<2x4x290xf32, #tpu.memory_space<vmem>>, vector<2x1x256xf32>
    %61 = vector.shape_cast %60 : vector<2x1x256xf32> to vector<2x256xf32>
    %c0_84 = arith.constant 0 : index
    %c3_85 = arith.constant 3 : index
    %c33_86 = arith.constant 33 : index
    %62 = vector.load %arg0[%c0_84, %c3_85, %c33_86] : memref<2x4x290xf32, #tpu.memory_space<vmem>>, vector<2x1x256xf32>
    %63 = vector.shape_cast %62 : vector<2x1x256xf32> to vector<2x256xf32>
    %c0_87 = arith.constant 0 : index
    %c0_88 = arith.constant 0 : index
    %c34 = arith.constant 34 : index
    %64 = vector.load %arg0[%c0_87, %c0_88, %c34] : memref<2x4x290xf32, #tpu.memory_space<vmem>>, vector<2x1x256xf32>
    %65 = vector.shape_cast %64 : vector<2x1x256xf32> to vector<2x256xf32>
    %c0_89 = arith.constant 0 : index
    %c1_90 = arith.constant 1 : index
    %c34_91 = arith.constant 34 : index
    %66 = vector.load %arg0[%c0_89, %c1_90, %c34_91] : memref<2x4x290xf32, #tpu.memory_space<vmem>>, vector<2x1x256xf32>
    %67 = vector.shape_cast %66 : vector<2x1x256xf32> to vector<2x256xf32>
    %c0_92 = arith.constant 0 : index
    %c2_93 = arith.constant 2 : index
    %c34_94 = arith.constant 34 : index
    %68 = vector.load %arg0[%c0_92, %c2_93, %c34_94] : memref<2x4x290xf32, #tpu.memory_space<vmem>>, vector<2x1x256xf32>
    %69 = vector.shape_cast %68 : vector<2x1x256xf32> to vector<2x256xf32>
    %c0_95 = arith.constant 0 : index
    %c3_96 = arith.constant 3 : index
    %c34_97 = arith.constant 34 : index
    %70 = vector.load %arg0[%c0_95, %c3_96, %c34_97] : memref<2x4x290xf32, #tpu.memory_space<vmem>>, vector<2x1x256xf32>
    %71 = vector.shape_cast %70 : vector<2x1x256xf32> to vector<2x256xf32>
    %c0_98 = arith.constant 0 : index
    %72 = memref.load %arg1[%c0_98] : memref<144xf32, #tpu.memory_space<smem>>
    %73 = vector.broadcast %72 : f32 to vector<2x256xf32>
    %74 = arith.mulf %1, %73 : vector<2x256xf32>
    %c9 = arith.constant 9 : index
    %75 = memref.load %arg1[%c9] : memref<144xf32, #tpu.memory_space<smem>>
    %76 = vector.broadcast %75 : f32 to vector<2x256xf32>
    %77 = arith.mulf %3, %76 : vector<2x256xf32>
    %78 = arith.addf %74, %77 : vector<2x256xf32>
    %c18_99 = arith.constant 18 : index
    %79 = memref.load %arg1[%c18_99] : memref<144xf32, #tpu.memory_space<smem>>
    %80 = vector.broadcast %79 : f32 to vector<2x256xf32>
    %81 = arith.mulf %5, %80 : vector<2x256xf32>
    %82 = arith.addf %78, %81 : vector<2x256xf32>
    %c27 = arith.constant 27 : index
    %83 = memref.load %arg1[%c27] : memref<144xf32, #tpu.memory_space<smem>>
    %84 = vector.broadcast %83 : f32 to vector<2x256xf32>
    %85 = arith.mulf %7, %84 : vector<2x256xf32>
    %86 = arith.addf %82, %85 : vector<2x256xf32>
    %c1_100 = arith.constant 1 : index
    %87 = memref.load %arg1[%c1_100] : memref<144xf32, #tpu.memory_space<smem>>
    %88 = vector.broadcast %87 : f32 to vector<2x256xf32>
    %89 = arith.mulf %9, %88 : vector<2x256xf32>
    %90 = arith.addf %86, %89 : vector<2x256xf32>
    %c10 = arith.constant 10 : index
    %91 = memref.load %arg1[%c10] : memref<144xf32, #tpu.memory_space<smem>>
    %92 = vector.broadcast %91 : f32 to vector<2x256xf32>
    %93 = arith.mulf %11, %92 : vector<2x256xf32>
    %94 = arith.addf %90, %93 : vector<2x256xf32>
    %c19 = arith.constant 19 : index
    %95 = memref.load %arg1[%c19] : memref<144xf32, #tpu.memory_space<smem>>
    %96 = vector.broadcast %95 : f32 to vector<2x256xf32>
    %97 = arith.mulf %13, %96 : vector<2x256xf32>
    %98 = arith.addf %94, %97 : vector<2x256xf32>
    %c28 = arith.constant 28 : index
    %99 = memref.load %arg1[%c28] : memref<144xf32, #tpu.memory_space<smem>>
    %100 = vector.broadcast %99 : f32 to vector<2x256xf32>
    %101 = arith.mulf %15, %100 : vector<2x256xf32>
    %102 = arith.addf %98, %101 : vector<2x256xf32>
    %c2_101 = arith.constant 2 : index
    %103 = memref.load %arg1[%c2_101] : memref<144xf32, #tpu.memory_space<smem>>
    %104 = vector.broadcast %103 : f32 to vector<2x256xf32>
    %105 = arith.mulf %17, %104 : vector<2x256xf32>
    %106 = arith.addf %102, %105 : vector<2x256xf32>
    %c11 = arith.constant 11 : index
    %107 = memref.load %arg1[%c11] : memref<144xf32, #tpu.memory_space<smem>>
    %108 = vector.broadcast %107 : f32 to vector<2x256xf32>
    %109 = arith.mulf %19, %108 : vector<2x256xf32>
    %110 = arith.addf %106, %109 : vector<2x256xf32>
    %c20 = arith.constant 20 : index
    %111 = memref.load %arg1[%c20] : memref<144xf32, #tpu.memory_space<smem>>
    %112 = vector.broadcast %111 : f32 to vector<2x256xf32>
    %113 = arith.mulf %21, %112 : vector<2x256xf32>
    %114 = arith.addf %110, %113 : vector<2x256xf32>
    %c29 = arith.constant 29 : index
    %115 = memref.load %arg1[%c29] : memref<144xf32, #tpu.memory_space<smem>>
    %116 = vector.broadcast %115 : f32 to vector<2x256xf32>
    %117 = arith.mulf %23, %116 : vector<2x256xf32>
    %118 = arith.addf %114, %117 : vector<2x256xf32>
    %c3_102 = arith.constant 3 : index
    %119 = memref.load %arg1[%c3_102] : memref<144xf32, #tpu.memory_space<smem>>
    %120 = vector.broadcast %119 : f32 to vector<2x256xf32>
    %121 = arith.mulf %25, %120 : vector<2x256xf32>
    %c12 = arith.constant 12 : index
    %122 = memref.load %arg1[%c12] : memref<144xf32, #tpu.memory_space<smem>>
    %123 = vector.broadcast %122 : f32 to vector<2x256xf32>
    %124 = arith.mulf %27, %123 : vector<2x256xf32>
    %125 = arith.addf %121, %124 : vector<2x256xf32>
    %c21 = arith.constant 21 : index
    %126 = memref.load %arg1[%c21] : memref<144xf32, #tpu.memory_space<smem>>
    %127 = vector.broadcast %126 : f32 to vector<2x256xf32>
    %128 = arith.mulf %29, %127 : vector<2x256xf32>
    %129 = arith.addf %125, %128 : vector<2x256xf32>
    %c30 = arith.constant 30 : index
    %130 = memref.load %arg1[%c30] : memref<144xf32, #tpu.memory_space<smem>>
    %131 = vector.broadcast %130 : f32 to vector<2x256xf32>
    %132 = arith.mulf %31, %131 : vector<2x256xf32>
    %133 = arith.addf %129, %132 : vector<2x256xf32>
    %c4 = arith.constant 4 : index
    %134 = memref.load %arg1[%c4] : memref<144xf32, #tpu.memory_space<smem>>
    %135 = vector.broadcast %134 : f32 to vector<2x256xf32>
    %136 = arith.mulf %33, %135 : vector<2x256xf32>
    %137 = arith.addf %133, %136 : vector<2x256xf32>
    %c13 = arith.constant 13 : index
    %138 = memref.load %arg1[%c13] : memref<144xf32, #tpu.memory_space<smem>>
    %139 = vector.broadcast %138 : f32 to vector<2x256xf32>
    %140 = arith.mulf %35, %139 : vector<2x256xf32>
    %141 = arith.addf %137, %140 : vector<2x256xf32>
    %c22 = arith.constant 22 : index
    %142 = memref.load %arg1[%c22] : memref<144xf32, #tpu.memory_space<smem>>
    %143 = vector.broadcast %142 : f32 to vector<2x256xf32>
    %144 = arith.mulf %37, %143 : vector<2x256xf32>
    %145 = arith.addf %141, %144 : vector<2x256xf32>
    %c31 = arith.constant 31 : index
    %146 = memref.load %arg1[%c31] : memref<144xf32, #tpu.memory_space<smem>>
    %147 = vector.broadcast %146 : f32 to vector<2x256xf32>
    %148 = arith.mulf %39, %147 : vector<2x256xf32>
    %149 = arith.addf %145, %148 : vector<2x256xf32>
    %c5 = arith.constant 5 : index
    %150 = memref.load %arg1[%c5] : memref<144xf32, #tpu.memory_space<smem>>
    %151 = vector.broadcast %150 : f32 to vector<2x256xf32>
    %152 = arith.mulf %41, %151 : vector<2x256xf32>
    %153 = arith.addf %149, %152 : vector<2x256xf32>
    %c14 = arith.constant 14 : index
    %154 = memref.load %arg1[%c14] : memref<144xf32, #tpu.memory_space<smem>>
    %155 = vector.broadcast %154 : f32 to vector<2x256xf32>
    %156 = arith.mulf %43, %155 : vector<2x256xf32>
    %157 = arith.addf %153, %156 : vector<2x256xf32>
    %c23 = arith.constant 23 : index
    %158 = memref.load %arg1[%c23] : memref<144xf32, #tpu.memory_space<smem>>
    %159 = vector.broadcast %158 : f32 to vector<2x256xf32>
    %160 = arith.mulf %45, %159 : vector<2x256xf32>
    %161 = arith.addf %157, %160 : vector<2x256xf32>
    %c32_103 = arith.constant 32 : index
    %162 = memref.load %arg1[%c32_103] : memref<144xf32, #tpu.memory_space<smem>>
    %163 = vector.broadcast %162 : f32 to vector<2x256xf32>
    %164 = arith.mulf %47, %163 : vector<2x256xf32>
    %165 = arith.addf %161, %164 : vector<2x256xf32>
    %c6 = arith.constant 6 : index
    %166 = memref.load %arg1[%c6] : memref<144xf32, #tpu.memory_space<smem>>
    %167 = vector.broadcast %166 : f32 to vector<2x256xf32>
    %168 = arith.mulf %49, %167 : vector<2x256xf32>
    %c15 = arith.constant 15 : index
    %169 = memref.load %arg1[%c15] : memref<144xf32, #tpu.memory_space<smem>>
    %170 = vector.broadcast %169 : f32 to vector<2x256xf32>
    %171 = arith.mulf %51, %170 : vector<2x256xf32>
    %172 = arith.addf %168, %171 : vector<2x256xf32>
    %c24 = arith.constant 24 : index
    %173 = memref.load %arg1[%c24] : memref<144xf32, #tpu.memory_space<smem>>
    %174 = vector.broadcast %173 : f32 to vector<2x256xf32>
    %175 = arith.mulf %53, %174 : vector<2x256xf32>
    %176 = arith.addf %172, %175 : vector<2x256xf32>
    %c33_104 = arith.constant 33 : index
    %177 = memref.load %arg1[%c33_104] : memref<144xf32, #tpu.memory_space<smem>>
    %178 = vector.broadcast %177 : f32 to vector<2x256xf32>
    %179 = arith.mulf %55, %178 : vector<2x256xf32>
    %180 = arith.addf %176, %179 : vector<2x256xf32>
    %c7 = arith.constant 7 : index
    %181 = memref.load %arg1[%c7] : memref<144xf32, #tpu.memory_space<smem>>
    %182 = vector.broadcast %181 : f32 to vector<2x256xf32>
    %183 = arith.mulf %57, %182 : vector<2x256xf32>
    %184 = arith.addf %180, %183 : vector<2x256xf32>
    %c16_105 = arith.constant 16 : index
    %185 = memref.load %arg1[%c16_105] : memref<144xf32, #tpu.memory_space<smem>>
    %186 = vector.broadcast %185 : f32 to vector<2x256xf32>
    %187 = arith.mulf %59, %186 : vector<2x256xf32>
    %188 = arith.addf %184, %187 : vector<2x256xf32>
    %c25 = arith.constant 25 : index
    %189 = memref.load %arg1[%c25] : memref<144xf32, #tpu.memory_space<smem>>
    %190 = vector.broadcast %189 : f32 to vector<2x256xf32>
    %191 = arith.mulf %61, %190 : vector<2x256xf32>
    %192 = arith.addf %188, %191 : vector<2x256xf32>
    %c34_106 = arith.constant 34 : index
    %193 = memref.load %arg1[%c34_106] : memref<144xf32, #tpu.memory_space<smem>>
    %194 = vector.broadcast %193 : f32 to vector<2x256xf32>
    %195 = arith.mulf %63, %194 : vector<2x256xf32>
    %196 = arith.addf %192, %195 : vector<2x256xf32>
    %c8 = arith.constant 8 : index
    %197 = memref.load %arg1[%c8] : memref<144xf32, #tpu.memory_space<smem>>
    %198 = vector.broadcast %197 : f32 to vector<2x256xf32>
    %199 = arith.mulf %65, %198 : vector<2x256xf32>
    %200 = arith.addf %196, %199 : vector<2x256xf32>
    %c17_107 = arith.constant 17 : index
    %201 = memref.load %arg1[%c17_107] : memref<144xf32, #tpu.memory_space<smem>>
    %202 = vector.broadcast %201 : f32 to vector<2x256xf32>
    %203 = arith.mulf %67, %202 : vector<2x256xf32>
    %204 = arith.addf %200, %203 : vector<2x256xf32>
    %c26 = arith.constant 26 : index
    %205 = memref.load %arg1[%c26] : memref<144xf32, #tpu.memory_space<smem>>
    %206 = vector.broadcast %205 : f32 to vector<2x256xf32>
    %207 = arith.mulf %69, %206 : vector<2x256xf32>
    %208 = arith.addf %204, %207 : vector<2x256xf32>
    %c35 = arith.constant 35 : index
    %209 = memref.load %arg1[%c35] : memref<144xf32, #tpu.memory_space<smem>>
    %210 = vector.broadcast %209 : f32 to vector<2x256xf32>
    %211 = arith.mulf %71, %210 : vector<2x256xf32>
    %212 = arith.addf %208, %211 : vector<2x256xf32>
    %213 = arith.addf %118, %165 : vector<2x256xf32>
    %c0_108 = arith.constant 0 : index
    %214 = memref.load %arg2[%c0_108] : memref<4xf32, #tpu.memory_space<smem>>
    %215 = vector.broadcast %214 : f32 to vector<2x256xf32>
    %216 = arith.addf %212, %215 : vector<2x256xf32>
    %217 = arith.addf %213, %216 : vector<2x256xf32>
    %218 = math.tanh %217 : vector<2x256xf32>
    %c0_109 = arith.constant 0 : index
    %c0_110 = arith.constant 0 : index
    %c0_111 = arith.constant 0 : index
    %219 = vector.load %arg3[%c0_109, %c0_110, %c0_111] : memref<2x4x256xf32, #tpu.memory_space<vmem>>, vector<2x1x256xf32>
    %220 = vector.shape_cast %219 : vector<2x1x256xf32> to vector<2x256xf32>
    %221 = vector.shape_cast %218 : vector<2x256xf32> to vector<2x1x256xf32>
    tpu.vector_store %arg3[%c0_109, %c0_110, %c0_111], %221 {strides = array<i32>} : memref<2x4x256xf32, #tpu.memory_space<vmem>>, vector<2x1x256xf32>,
    %c36 = arith.constant 36 : index
    %222 = memref.load %arg1[%c36] : memref<144xf32, #tpu.memory_space<smem>>
    %223 = vector.broadcast %222 : f32 to vector<2x256xf32>
    %224 = arith.mulf %1, %223 : vector<2x256xf32>
    %c45 = arith.constant 45 : index
    %225 = memref.load %arg1[%c45] : memref<144xf32, #tpu.memory_space<smem>>
    %226 = vector.broadcast %225 : f32 to vector<2x256xf32>
    %227 = arith.mulf %3, %226 : vector<2x256xf32>
    %228 = arith.addf %224, %227 : vector<2x256xf32>
    %c54 = arith.constant 54 : index
    %229 = memref.load %arg1[%c54] : memref<144xf32, #tpu.memory_space<smem>>
    %230 = vector.broadcast %229 : f32 to vector<2x256xf32>
    %231 = arith.mulf %5, %230 : vector<2x256xf32>
    %232 = arith.addf %228, %231 : vector<2x256xf32>
    %c63 = arith.constant 63 : index
    %233 = memref.load %arg1[%c63] : memref<144xf32, #tpu.memory_space<smem>>
    %234 = vector.broadcast %233 : f32 to vector<2x256xf32>
    %235 = arith.mulf %7, %234 : vector<2x256xf32>
    %236 = arith.addf %232, %235 : vector<2x256xf32>
    %c37 = arith.constant 37 : index
    %237 = memref.load %arg1[%c37] : memref<144xf32, #tpu.memory_space<smem>>
    %238 = vector.broadcast %237 : f32 to vector<2x256xf32>
    %239 = arith.mulf %9, %238 : vector<2x256xf32>
    %240 = arith.addf %236, %239 : vector<2x256xf32>
    %c46 = arith.constant 46 : index
    %241 = memref.load %arg1[%c46] : memref<144xf32, #tpu.memory_space<smem>>
    %242 = vector.broadcast %241 : f32 to vector<2x256xf32>
    %243 = arith.mulf %11, %242 : vector<2x256xf32>
    %244 = arith.addf %240, %243 : vector<2x256xf32>
    %c55 = arith.constant 55 : index
    %245 = memref.load %arg1[%c55] : memref<144xf32, #tpu.memory_space<smem>>
    %246 = vector.broadcast %245 : f32 to vector<2x256xf32>
    %247 = arith.mulf %13, %246 : vector<2x256xf32>
    %248 = arith.addf %244, %247 : vector<2x256xf32>
    %c64 = arith.constant 64 : index
    %249 = memref.load %arg1[%c64] : memref<144xf32, #tpu.memory_space<smem>>
    %250 = vector.broadcast %249 : f32 to vector<2x256xf32>
    %251 = arith.mulf %15, %250 : vector<2x256xf32>
    %252 = arith.addf %248, %251 : vector<2x256xf32>
    %c38 = arith.constant 38 : index
    %253 = memref.load %arg1[%c38] : memref<144xf32, #tpu.memory_space<smem>>
    %254 = vector.broadcast %253 : f32 to vector<2x256xf32>
    %255 = arith.mulf %17, %254 : vector<2x256xf32>
    %256 = arith.addf %252, %255 : vector<2x256xf32>
    %c47 = arith.constant 47 : index
    %257 = memref.load %arg1[%c47] : memref<144xf32, #tpu.memory_space<smem>>
    %258 = vector.broadcast %257 : f32 to vector<2x256xf32>
    %259 = arith.mulf %19, %258 : vector<2x256xf32>
    %260 = arith.addf %256, %259 : vector<2x256xf32>
    %c56 = arith.constant 56 : index
    %261 = memref.load %arg1[%c56] : memref<144xf32, #tpu.memory_space<smem>>
    %262 = vector.broadcast %261 : f32 to vector<2x256xf32>
    %263 = arith.mulf %21, %262 : vector<2x256xf32>
    %264 = arith.addf %260, %263 : vector<2x256xf32>
    %c65 = arith.constant 65 : index
    %265 = memref.load %arg1[%c65] : memref<144xf32, #tpu.memory_space<smem>>
    %266 = vector.broadcast %265 : f32 to vector<2x256xf32>
    %267 = arith.mulf %23, %266 : vector<2x256xf32>
    %268 = arith.addf %264, %267 : vector<2x256xf32>
    %c39 = arith.constant 39 : index
    %269 = memref.load %arg1[%c39] : memref<144xf32, #tpu.memory_space<smem>>
    %270 = vector.broadcast %269 : f32 to vector<2x256xf32>
    %271 = arith.mulf %25, %270 : vector<2x256xf32>
    %c48 = arith.constant 48 : index
    %272 = memref.load %arg1[%c48] : memref<144xf32, #tpu.memory_space<smem>>
    %273 = vector.broadcast %272 : f32 to vector<2x256xf32>
    %274 = arith.mulf %27, %273 : vector<2x256xf32>
    %275 = arith.addf %271, %274 : vector<2x256xf32>
    %c57 = arith.constant 57 : index
    %276 = memref.load %arg1[%c57] : memref<144xf32, #tpu.memory_space<smem>>
    %277 = vector.broadcast %276 : f32 to vector<2x256xf32>
    %278 = arith.mulf %29, %277 : vector<2x256xf32>
    %279 = arith.addf %275, %278 : vector<2x256xf32>
    %c66 = arith.constant 66 : index
    %280 = memref.load %arg1[%c66] : memref<144xf32, #tpu.memory_space<smem>>
    %281 = vector.broadcast %280 : f32 to vector<2x256xf32>
    %282 = arith.mulf %31, %281 : vector<2x256xf32>
    %283 = arith.addf %279, %282 : vector<2x256xf32>
    %c40 = arith.constant 40 : index
    %284 = memref.load %arg1[%c40] : memref<144xf32, #tpu.memory_space<smem>>
    %285 = vector.broadcast %284 : f32 to vector<2x256xf32>
    %286 = arith.mulf %33, %285 : vector<2x256xf32>
    %287 = arith.addf %283, %286 : vector<2x256xf32>
    %c49 = arith.constant 49 : index
    %288 = memref.load %arg1[%c49] : memref<144xf32, #tpu.memory_space<smem>>
    %289 = vector.broadcast %288 : f32 to vector<2x256xf32>
    %290 = arith.mulf %35, %289 : vector<2x256xf32>
    %291 = arith.addf %287, %290 : vector<2x256xf32>
    %c58 = arith.constant 58 : index
    %292 = memref.load %arg1[%c58] : memref<144xf32, #tpu.memory_space<smem>>
    %293 = vector.broadcast %292 : f32 to vector<2x256xf32>
    %294 = arith.mulf %37, %293 : vector<2x256xf32>
    %295 = arith.addf %291, %294 : vector<2x256xf32>
    %c67 = arith.constant 67 : index
    %296 = memref.load %arg1[%c67] : memref<144xf32, #tpu.memory_space<smem>>
    %297 = vector.broadcast %296 : f32 to vector<2x256xf32>
    %298 = arith.mulf %39, %297 : vector<2x256xf32>
    %299 = arith.addf %295, %298 : vector<2x256xf32>
    %c41 = arith.constant 41 : index
    %300 = memref.load %arg1[%c41] : memref<144xf32, #tpu.memory_space<smem>>
    %301 = vector.broadcast %300 : f32 to vector<2x256xf32>
    %302 = arith.mulf %41, %301 : vector<2x256xf32>
    %303 = arith.addf %299, %302 : vector<2x256xf32>
    %c50 = arith.constant 50 : index
    %304 = memref.load %arg1[%c50] : memref<144xf32, #tpu.memory_space<smem>>
    %305 = vector.broadcast %304 : f32 to vector<2x256xf32>
    %306 = arith.mulf %43, %305 : vector<2x256xf32>
    %307 = arith.addf %303, %306 : vector<2x256xf32>
    %c59 = arith.constant 59 : index
    %308 = memref.load %arg1[%c59] : memref<144xf32, #tpu.memory_space<smem>>
    %309 = vector.broadcast %308 : f32 to vector<2x256xf32>
    %310 = arith.mulf %45, %309 : vector<2x256xf32>
    %311 = arith.addf %307, %310 : vector<2x256xf32>
    %c68 = arith.constant 68 : index
    %312 = memref.load %arg1[%c68] : memref<144xf32, #tpu.memory_space<smem>>
    %313 = vector.broadcast %312 : f32 to vector<2x256xf32>
    %314 = arith.mulf %47, %313 : vector<2x256xf32>
    %315 = arith.addf %311, %314 : vector<2x256xf32>
    %c42 = arith.constant 42 : index
    %316 = memref.load %arg1[%c42] : memref<144xf32, #tpu.memory_space<smem>>
    %317 = vector.broadcast %316 : f32 to vector<2x256xf32>
    %318 = arith.mulf %49, %317 : vector<2x256xf32>
    %c51 = arith.constant 51 : index
    %319 = memref.load %arg1[%c51] : memref<144xf32, #tpu.memory_space<smem>>
    %320 = vector.broadcast %319 : f32 to vector<2x256xf32>
    %321 = arith.mulf %51, %320 : vector<2x256xf32>
    %322 = arith.addf %318, %321 : vector<2x256xf32>
    %c60 = arith.constant 60 : index
    %323 = memref.load %arg1[%c60] : memref<144xf32, #tpu.memory_space<smem>>
    %324 = vector.broadcast %323 : f32 to vector<2x256xf32>
    %325 = arith.mulf %53, %324 : vector<2x256xf32>
    %326 = arith.addf %322, %325 : vector<2x256xf32>
    %c69 = arith.constant 69 : index
    %327 = memref.load %arg1[%c69] : memref<144xf32, #tpu.memory_space<smem>>
    %328 = vector.broadcast %327 : f32 to vector<2x256xf32>
    %329 = arith.mulf %55, %328 : vector<2x256xf32>
    %330 = arith.addf %326, %329 : vector<2x256xf32>
    %c43 = arith.constant 43 : index
    %331 = memref.load %arg1[%c43] : memref<144xf32, #tpu.memory_space<smem>>
    %332 = vector.broadcast %331 : f32 to vector<2x256xf32>
    %333 = arith.mulf %57, %332 : vector<2x256xf32>
    %334 = arith.addf %330, %333 : vector<2x256xf32>
    %c52 = arith.constant 52 : index
    %335 = memref.load %arg1[%c52] : memref<144xf32, #tpu.memory_space<smem>>
    %336 = vector.broadcast %335 : f32 to vector<2x256xf32>
    %337 = arith.mulf %59, %336 : vector<2x256xf32>
    %338 = arith.addf %334, %337 : vector<2x256xf32>
    %c61 = arith.constant 61 : index
    %339 = memref.load %arg1[%c61] : memref<144xf32, #tpu.memory_space<smem>>
    %340 = vector.broadcast %339 : f32 to vector<2x256xf32>
    %341 = arith.mulf %61, %340 : vector<2x256xf32>
    %342 = arith.addf %338, %341 : vector<2x256xf32>
    %c70 = arith.constant 70 : index
    %343 = memref.load %arg1[%c70] : memref<144xf32, #tpu.memory_space<smem>>
    %344 = vector.broadcast %343 : f32 to vector<2x256xf32>
    %345 = arith.mulf %63, %344 : vector<2x256xf32>
    %346 = arith.addf %342, %345 : vector<2x256xf32>
    %c44 = arith.constant 44 : index
    %347 = memref.load %arg1[%c44] : memref<144xf32, #tpu.memory_space<smem>>
    %348 = vector.broadcast %347 : f32 to vector<2x256xf32>
    %349 = arith.mulf %65, %348 : vector<2x256xf32>
    %350 = arith.addf %346, %349 : vector<2x256xf32>
    %c53 = arith.constant 53 : index
    %351 = memref.load %arg1[%c53] : memref<144xf32, #tpu.memory_space<smem>>
    %352 = vector.broadcast %351 : f32 to vector<2x256xf32>
    %353 = arith.mulf %67, %352 : vector<2x256xf32>
    %354 = arith.addf %350, %353 : vector<2x256xf32>
    %c62 = arith.constant 62 : index
    %355 = memref.load %arg1[%c62] : memref<144xf32, #tpu.memory_space<smem>>
    %356 = vector.broadcast %355 : f32 to vector<2x256xf32>
    %357 = arith.mulf %69, %356 : vector<2x256xf32>
    %358 = arith.addf %354, %357 : vector<2x256xf32>
    %c71 = arith.constant 71 : index
    %359 = memref.load %arg1[%c71] : memref<144xf32, #tpu.memory_space<smem>>
    %360 = vector.broadcast %359 : f32 to vector<2x256xf32>
    %361 = arith.mulf %71, %360 : vector<2x256xf32>
    %362 = arith.addf %358, %361 : vector<2x256xf32>
    %363 = arith.addf %268, %315 : vector<2x256xf32>
    %c1_112 = arith.constant 1 : index
    %364 = memref.load %arg2[%c1_112] : memref<4xf32, #tpu.memory_space<smem>>
    %365 = vector.broadcast %364 : f32 to vector<2x256xf32>
    %366 = arith.addf %362, %365 : vector<2x256xf32>
    %367 = arith.addf %363, %366 : vector<2x256xf32>
    %368 = math.tanh %367 : vector<2x256xf32>
    %c0_113 = arith.constant 0 : index
    %c1_114 = arith.constant 1 : index
    %c0_115 = arith.constant 0 : index
    %369 = vector.load %arg3[%c0_113, %c1_114, %c0_115] : memref<2x4x256xf32, #tpu.memory_space<vmem>>, vector<2x1x256xf32>
    %370 = vector.shape_cast %369 : vector<2x1x256xf32> to vector<2x256xf32>
    %371 = vector.shape_cast %368 : vector<2x256xf32> to vector<2x1x256xf32>
    tpu.vector_store %arg3[%c0_113, %c1_114, %c0_115], %371 {strides = array<i32>} : memref<2x4x256xf32, #tpu.memory_space<vmem>>, vector<2x1x256xf32>,
    %c72 = arith.constant 72 : index
    %372 = memref.load %arg1[%c72] : memref<144xf32, #tpu.memory_space<smem>>
    %373 = vector.broadcast %372 : f32 to vector<2x256xf32>
    %374 = arith.mulf %1, %373 : vector<2x256xf32>
    %c81 = arith.constant 81 : index
    %375 = memref.load %arg1[%c81] : memref<144xf32, #tpu.memory_space<smem>>
    %376 = vector.broadcast %375 : f32 to vector<2x256xf32>
    %377 = arith.mulf %3, %376 : vector<2x256xf32>
    %378 = arith.addf %374, %377 : vector<2x256xf32>
    %c90 = arith.constant 90 : index
    %379 = memref.load %arg1[%c90] : memref<144xf32, #tpu.memory_space<smem>>
    %380 = vector.broadcast %379 : f32 to vector<2x256xf32>
    %381 = arith.mulf %5, %380 : vector<2x256xf32>
    %382 = arith.addf %378, %381 : vector<2x256xf32>
    %c99 = arith.constant 99 : index
    %383 = memref.load %arg1[%c99] : memref<144xf32, #tpu.memory_space<smem>>
    %384 = vector.broadcast %383 : f32 to vector<2x256xf32>
    %385 = arith.mulf %7, %384 : vector<2x256xf32>
    %386 = arith.addf %382, %385 : vector<2x256xf32>
    %c73 = arith.constant 73 : index
    %387 = memref.load %arg1[%c73] : memref<144xf32, #tpu.memory_space<smem>>
    %388 = vector.broadcast %387 : f32 to vector<2x256xf32>
    %389 = arith.mulf %9, %388 : vector<2x256xf32>
    %390 = arith.addf %386, %389 : vector<2x256xf32>
    %c82 = arith.constant 82 : index
    %391 = memref.load %arg1[%c82] : memref<144xf32, #tpu.memory_space<smem>>
    %392 = vector.broadcast %391 : f32 to vector<2x256xf32>
    %393 = arith.mulf %11, %392 : vector<2x256xf32>
    %394 = arith.addf %390, %393 : vector<2x256xf32>
    %c91 = arith.constant 91 : index
    %395 = memref.load %arg1[%c91] : memref<144xf32, #tpu.memory_space<smem>>
    %396 = vector.broadcast %395 : f32 to vector<2x256xf32>
    %397 = arith.mulf %13, %396 : vector<2x256xf32>
    %398 = arith.addf %394, %397 : vector<2x256xf32>
    %c100 = arith.constant 100 : index
    %399 = memref.load %arg1[%c100] : memref<144xf32, #tpu.memory_space<smem>>
    %400 = vector.broadcast %399 : f32 to vector<2x256xf32>
    %401 = arith.mulf %15, %400 : vector<2x256xf32>
    %402 = arith.addf %398, %401 : vector<2x256xf32>
    %c74 = arith.constant 74 : index
    %403 = memref.load %arg1[%c74] : memref<144xf32, #tpu.memory_space<smem>>
    %404 = vector.broadcast %403 : f32 to vector<2x256xf32>
    %405 = arith.mulf %17, %404 : vector<2x256xf32>
    %406 = arith.addf %402, %405 : vector<2x256xf32>
    %c83 = arith.constant 83 : index
    %407 = memref.load %arg1[%c83] : memref<144xf32, #tpu.memory_space<smem>>
    %408 = vector.broadcast %407 : f32 to vector<2x256xf32>
    %409 = arith.mulf %19, %408 : vector<2x256xf32>
    %410 = arith.addf %406, %409 : vector<2x256xf32>
    %c92 = arith.constant 92 : index
    %411 = memref.load %arg1[%c92] : memref<144xf32, #tpu.memory_space<smem>>
    %412 = vector.broadcast %411 : f32 to vector<2x256xf32>
    %413 = arith.mulf %21, %412 : vector<2x256xf32>
    %414 = arith.addf %410, %413 : vector<2x256xf32>
    %c101 = arith.constant 101 : index
    %415 = memref.load %arg1[%c101] : memref<144xf32, #tpu.memory_space<smem>>
    %416 = vector.broadcast %415 : f32 to vector<2x256xf32>
    %417 = arith.mulf %23, %416 : vector<2x256xf32>
    %418 = arith.addf %414, %417 : vector<2x256xf32>
    %c75 = arith.constant 75 : index
    %419 = memref.load %arg1[%c75] : memref<144xf32, #tpu.memory_space<smem>>
    %420 = vector.broadcast %419 : f32 to vector<2x256xf32>
    %421 = arith.mulf %25, %420 : vector<2x256xf32>
    %c84 = arith.constant 84 : index
    %422 = memref.load %arg1[%c84] : memref<144xf32, #tpu.memory_space<smem>>
    %423 = vector.broadcast %422 : f32 to vector<2x256xf32>
    %424 = arith.mulf %27, %423 : vector<2x256xf32>
    %425 = arith.addf %421, %424 : vector<2x256xf32>
    %c93 = arith.constant 93 : index
    %426 = memref.load %arg1[%c93] : memref<144xf32, #tpu.memory_space<smem>>
    %427 = vector.broadcast %426 : f32 to vector<2x256xf32>
    %428 = arith.mulf %29, %427 : vector<2x256xf32>
    %429 = arith.addf %425, %428 : vector<2x256xf32>
    %c102 = arith.constant 102 : index
    %430 = memref.load %arg1[%c102] : memref<144xf32, #tpu.memory_space<smem>>
    %431 = vector.broadcast %430 : f32 to vector<2x256xf32>
    %432 = arith.mulf %31, %431 : vector<2x256xf32>
    %433 = arith.addf %429, %432 : vector<2x256xf32>
    %c76 = arith.constant 76 : index
    %434 = memref.load %arg1[%c76] : memref<144xf32, #tpu.memory_space<smem>>
    %435 = vector.broadcast %434 : f32 to vector<2x256xf32>
    %436 = arith.mulf %33, %435 : vector<2x256xf32>
    %437 = arith.addf %433, %436 : vector<2x256xf32>
    %c85 = arith.constant 85 : index
    %438 = memref.load %arg1[%c85] : memref<144xf32, #tpu.memory_space<smem>>
    %439 = vector.broadcast %438 : f32 to vector<2x256xf32>
    %440 = arith.mulf %35, %439 : vector<2x256xf32>
    %441 = arith.addf %437, %440 : vector<2x256xf32>
    %c94 = arith.constant 94 : index
    %442 = memref.load %arg1[%c94] : memref<144xf32, #tpu.memory_space<smem>>
    %443 = vector.broadcast %442 : f32 to vector<2x256xf32>
    %444 = arith.mulf %37, %443 : vector<2x256xf32>
    %445 = arith.addf %441, %444 : vector<2x256xf32>
    %c103 = arith.constant 103 : index
    %446 = memref.load %arg1[%c103] : memref<144xf32, #tpu.memory_space<smem>>
    %447 = vector.broadcast %446 : f32 to vector<2x256xf32>
    %448 = arith.mulf %39, %447 : vector<2x256xf32>
    %449 = arith.addf %445, %448 : vector<2x256xf32>
    %c77 = arith.constant 77 : index
    %450 = memref.load %arg1[%c77] : memref<144xf32, #tpu.memory_space<smem>>
    %451 = vector.broadcast %450 : f32 to vector<2x256xf32>
    %452 = arith.mulf %41, %451 : vector<2x256xf32>
    %453 = arith.addf %449, %452 : vector<2x256xf32>
    %c86 = arith.constant 86 : index
    %454 = memref.load %arg1[%c86] : memref<144xf32, #tpu.memory_space<smem>>
    %455 = vector.broadcast %454 : f32 to vector<2x256xf32>
    %456 = arith.mulf %43, %455 : vector<2x256xf32>
    %457 = arith.addf %453, %456 : vector<2x256xf32>
    %c95 = arith.constant 95 : index
    %458 = memref.load %arg1[%c95] : memref<144xf32, #tpu.memory_space<smem>>
    %459 = vector.broadcast %458 : f32 to vector<2x256xf32>
    %460 = arith.mulf %45, %459 : vector<2x256xf32>
    %461 = arith.addf %457, %460 : vector<2x256xf32>
    %c104 = arith.constant 104 : index
    %462 = memref.load %arg1[%c104] : memref<144xf32, #tpu.memory_space<smem>>
    %463 = vector.broadcast %462 : f32 to vector<2x256xf32>
    %464 = arith.mulf %47, %463 : vector<2x256xf32>
    %465 = arith.addf %461, %464 : vector<2x256xf32>
    %c78 = arith.constant 78 : index
    %466 = memref.load %arg1[%c78] : memref<144xf32, #tpu.memory_space<smem>>
    %467 = vector.broadcast %466 : f32 to vector<2x256xf32>
    %468 = arith.mulf %49, %467 : vector<2x256xf32>
    %c87 = arith.constant 87 : index
    %469 = memref.load %arg1[%c87] : memref<144xf32, #tpu.memory_space<smem>>
    %470 = vector.broadcast %469 : f32 to vector<2x256xf32>
    %471 = arith.mulf %51, %470 : vector<2x256xf32>
    %472 = arith.addf %468, %471 : vector<2x256xf32>
    %c96 = arith.constant 96 : index
    %473 = memref.load %arg1[%c96] : memref<144xf32, #tpu.memory_space<smem>>
    %474 = vector.broadcast %473 : f32 to vector<2x256xf32>
    %475 = arith.mulf %53, %474 : vector<2x256xf32>
    %476 = arith.addf %472, %475 : vector<2x256xf32>
    %c105 = arith.constant 105 : index
    %477 = memref.load %arg1[%c105] : memref<144xf32, #tpu.memory_space<smem>>
    %478 = vector.broadcast %477 : f32 to vector<2x256xf32>
    %479 = arith.mulf %55, %478 : vector<2x256xf32>
    %480 = arith.addf %476, %479 : vector<2x256xf32>
    %c79 = arith.constant 79 : index
    %481 = memref.load %arg1[%c79] : memref<144xf32, #tpu.memory_space<smem>>
    %482 = vector.broadcast %481 : f32 to vector<2x256xf32>
    %483 = arith.mulf %57, %482 : vector<2x256xf32>
    %484 = arith.addf %480, %483 : vector<2x256xf32>
    %c88 = arith.constant 88 : index
    %485 = memref.load %arg1[%c88] : memref<144xf32, #tpu.memory_space<smem>>
    %486 = vector.broadcast %485 : f32 to vector<2x256xf32>
    %487 = arith.mulf %59, %486 : vector<2x256xf32>
    %488 = arith.addf %484, %487 : vector<2x256xf32>
    %c97 = arith.constant 97 : index
    %489 = memref.load %arg1[%c97] : memref<144xf32, #tpu.memory_space<smem>>
    %490 = vector.broadcast %489 : f32 to vector<2x256xf32>
    %491 = arith.mulf %61, %490 : vector<2x256xf32>
    %492 = arith.addf %488, %491 : vector<2x256xf32>
    %c106 = arith.constant 106 : index
    %493 = memref.load %arg1[%c106] : memref<144xf32, #tpu.memory_space<smem>>
    %494 = vector.broadcast %493 : f32 to vector<2x256xf32>
    %495 = arith.mulf %63, %494 : vector<2x256xf32>
    %496 = arith.addf %492, %495 : vector<2x256xf32>
    %c80 = arith.constant 80 : index
    %497 = memref.load %arg1[%c80] : memref<144xf32, #tpu.memory_space<smem>>
    %498 = vector.broadcast %497 : f32 to vector<2x256xf32>
    %499 = arith.mulf %65, %498 : vector<2x256xf32>
    %500 = arith.addf %496, %499 : vector<2x256xf32>
    %c89 = arith.constant 89 : index
    %501 = memref.load %arg1[%c89] : memref<144xf32, #tpu.memory_space<smem>>
    %502 = vector.broadcast %501 : f32 to vector<2x256xf32>
    %503 = arith.mulf %67, %502 : vector<2x256xf32>
    %504 = arith.addf %500, %503 : vector<2x256xf32>
    %c98 = arith.constant 98 : index
    %505 = memref.load %arg1[%c98] : memref<144xf32, #tpu.memory_space<smem>>
    %506 = vector.broadcast %505 : f32 to vector<2x256xf32>
    %507 = arith.mulf %69, %506 : vector<2x256xf32>
    %508 = arith.addf %504, %507 : vector<2x256xf32>
    %c107 = arith.constant 107 : index
    %509 = memref.load %arg1[%c107] : memref<144xf32, #tpu.memory_space<smem>>
    %510 = vector.broadcast %509 : f32 to vector<2x256xf32>
    %511 = arith.mulf %71, %510 : vector<2x256xf32>
    %512 = arith.addf %508, %511 : vector<2x256xf32>
    %513 = arith.addf %418, %465 : vector<2x256xf32>
    %c2_116 = arith.constant 2 : index
    %514 = memref.load %arg2[%c2_116] : memref<4xf32, #tpu.memory_space<smem>>
    %515 = vector.broadcast %514 : f32 to vector<2x256xf32>
    %516 = arith.addf %512, %515 : vector<2x256xf32>
    %517 = arith.addf %513, %516 : vector<2x256xf32>
    %518 = math.tanh %517 : vector<2x256xf32>
    %c0_117 = arith.constant 0 : index
    %c2_118 = arith.constant 2 : index
    %c0_119 = arith.constant 0 : index
    %519 = vector.load %arg3[%c0_117, %c2_118, %c0_119] : memref<2x4x256xf32, #tpu.memory_space<vmem>>, vector<2x1x256xf32>
    %520 = vector.shape_cast %519 : vector<2x1x256xf32> to vector<2x256xf32>
    %521 = vector.shape_cast %518 : vector<2x256xf32> to vector<2x1x256xf32>
    tpu.vector_store %arg3[%c0_117, %c2_118, %c0_119], %521 {strides = array<i32>} : memref<2x4x256xf32, #tpu.memory_space<vmem>>, vector<2x1x256xf32>,
    %c108 = arith.constant 108 : index
    %522 = memref.load %arg1[%c108] : memref<144xf32, #tpu.memory_space<smem>>
    %523 = vector.broadcast %522 : f32 to vector<2x256xf32>
    %524 = arith.mulf %1, %523 : vector<2x256xf32>
    %c117 = arith.constant 117 : index
    %525 = memref.load %arg1[%c117] : memref<144xf32, #tpu.memory_space<smem>>
    %526 = vector.broadcast %525 : f32 to vector<2x256xf32>
    %527 = arith.mulf %3, %526 : vector<2x256xf32>
    %528 = arith.addf %524, %527 : vector<2x256xf32>
    %c126 = arith.constant 126 : index
    %529 = memref.load %arg1[%c126] : memref<144xf32, #tpu.memory_space<smem>>
    %530 = vector.broadcast %529 : f32 to vector<2x256xf32>
    %531 = arith.mulf %5, %530 : vector<2x256xf32>
    %532 = arith.addf %528, %531 : vector<2x256xf32>
    %c135 = arith.constant 135 : index
    %533 = memref.load %arg1[%c135] : memref<144xf32, #tpu.memory_space<smem>>
    %534 = vector.broadcast %533 : f32 to vector<2x256xf32>
    %535 = arith.mulf %7, %534 : vector<2x256xf32>
    %536 = arith.addf %532, %535 : vector<2x256xf32>
    %c109 = arith.constant 109 : index
    %537 = memref.load %arg1[%c109] : memref<144xf32, #tpu.memory_space<smem>>
    %538 = vector.broadcast %537 : f32 to vector<2x256xf32>
    %539 = arith.mulf %9, %538 : vector<2x256xf32>
    %540 = arith.addf %536, %539 : vector<2x256xf32>
    %c118 = arith.constant 118 : index
    %541 = memref.load %arg1[%c118] : memref<144xf32, #tpu.memory_space<smem>>
    %542 = vector.broadcast %541 : f32 to vector<2x256xf32>
    %543 = arith.mulf %11, %542 : vector<2x256xf32>
    %544 = arith.addf %540, %543 : vector<2x256xf32>
    %c127 = arith.constant 127 : index
    %545 = memref.load %arg1[%c127] : memref<144xf32, #tpu.memory_space<smem>>
    %546 = vector.broadcast %545 : f32 to vector<2x256xf32>
    %547 = arith.mulf %13, %546 : vector<2x256xf32>
    %548 = arith.addf %544, %547 : vector<2x256xf32>
    %c136 = arith.constant 136 : index
    %549 = memref.load %arg1[%c136] : memref<144xf32, #tpu.memory_space<smem>>
    %550 = vector.broadcast %549 : f32 to vector<2x256xf32>
    %551 = arith.mulf %15, %550 : vector<2x256xf32>
    %552 = arith.addf %548, %551 : vector<2x256xf32>
    %c110 = arith.constant 110 : index
    %553 = memref.load %arg1[%c110] : memref<144xf32, #tpu.memory_space<smem>>
    %554 = vector.broadcast %553 : f32 to vector<2x256xf32>
    %555 = arith.mulf %17, %554 : vector<2x256xf32>
    %556 = arith.addf %552, %555 : vector<2x256xf32>
    %c119 = arith.constant 119 : index
    %557 = memref.load %arg1[%c119] : memref<144xf32, #tpu.memory_space<smem>>
    %558 = vector.broadcast %557 : f32 to vector<2x256xf32>
    %559 = arith.mulf %19, %558 : vector<2x256xf32>
    %560 = arith.addf %556, %559 : vector<2x256xf32>
    %c128 = arith.constant 128 : index
    %561 = memref.load %arg1[%c128] : memref<144xf32, #tpu.memory_space<smem>>
    %562 = vector.broadcast %561 : f32 to vector<2x256xf32>
    %563 = arith.mulf %21, %562 : vector<2x256xf32>
    %564 = arith.addf %560, %563 : vector<2x256xf32>
    %c137 = arith.constant 137 : index
    %565 = memref.load %arg1[%c137] : memref<144xf32, #tpu.memory_space<smem>>
    %566 = vector.broadcast %565 : f32 to vector<2x256xf32>
    %567 = arith.mulf %23, %566 : vector<2x256xf32>
    %568 = arith.addf %564, %567 : vector<2x256xf32>
    %c111 = arith.constant 111 : index
    %569 = memref.load %arg1[%c111] : memref<144xf32, #tpu.memory_space<smem>>
    %570 = vector.broadcast %569 : f32 to vector<2x256xf32>
    %571 = arith.mulf %25, %570 : vector<2x256xf32>
    %c120 = arith.constant 120 : index
    %572 = memref.load %arg1[%c120] : memref<144xf32, #tpu.memory_space<smem>>
    %573 = vector.broadcast %572 : f32 to vector<2x256xf32>
    %574 = arith.mulf %27, %573 : vector<2x256xf32>
    %575 = arith.addf %571, %574 : vector<2x256xf32>
    %c129 = arith.constant 129 : index
    %576 = memref.load %arg1[%c129] : memref<144xf32, #tpu.memory_space<smem>>
    %577 = vector.broadcast %576 : f32 to vector<2x256xf32>
    %578 = arith.mulf %29, %577 : vector<2x256xf32>
    %579 = arith.addf %575, %578 : vector<2x256xf32>
    %c138 = arith.constant 138 : index
    %580 = memref.load %arg1[%c138] : memref<144xf32, #tpu.memory_space<smem>>
    %581 = vector.broadcast %580 : f32 to vector<2x256xf32>
    %582 = arith.mulf %31, %581 : vector<2x256xf32>
    %583 = arith.addf %579, %582 : vector<2x256xf32>
    %c112 = arith.constant 112 : index
    %584 = memref.load %arg1[%c112] : memref<144xf32, #tpu.memory_space<smem>>
    %585 = vector.broadcast %584 : f32 to vector<2x256xf32>
    %586 = arith.mulf %33, %585 : vector<2x256xf32>
    %587 = arith.addf %583, %586 : vector<2x256xf32>
    %c121 = arith.constant 121 : index
    %588 = memref.load %arg1[%c121] : memref<144xf32, #tpu.memory_space<smem>>
    %589 = vector.broadcast %588 : f32 to vector<2x256xf32>
    %590 = arith.mulf %35, %589 : vector<2x256xf32>
    %591 = arith.addf %587, %590 : vector<2x256xf32>
    %c130 = arith.constant 130 : index
    %592 = memref.load %arg1[%c130] : memref<144xf32, #tpu.memory_space<smem>>
    %593 = vector.broadcast %592 : f32 to vector<2x256xf32>
    %594 = arith.mulf %37, %593 : vector<2x256xf32>
    %595 = arith.addf %591, %594 : vector<2x256xf32>
    %c139 = arith.constant 139 : index
    %596 = memref.load %arg1[%c139] : memref<144xf32, #tpu.memory_space<smem>>
    %597 = vector.broadcast %596 : f32 to vector<2x256xf32>
    %598 = arith.mulf %39, %597 : vector<2x256xf32>
    %599 = arith.addf %595, %598 : vector<2x256xf32>
    %c113 = arith.constant 113 : index
    %600 = memref.load %arg1[%c113] : memref<144xf32, #tpu.memory_space<smem>>
    %601 = vector.broadcast %600 : f32 to vector<2x256xf32>
    %602 = arith.mulf %41, %601 : vector<2x256xf32>
    %603 = arith.addf %599, %602 : vector<2x256xf32>
    %c122 = arith.constant 122 : index
    %604 = memref.load %arg1[%c122] : memref<144xf32, #tpu.memory_space<smem>>
    %605 = vector.broadcast %604 : f32 to vector<2x256xf32>
    %606 = arith.mulf %43, %605 : vector<2x256xf32>
    %607 = arith.addf %603, %606 : vector<2x256xf32>
    %c131 = arith.constant 131 : index
    %608 = memref.load %arg1[%c131] : memref<144xf32, #tpu.memory_space<smem>>
    %609 = vector.broadcast %608 : f32 to vector<2x256xf32>
    %610 = arith.mulf %45, %609 : vector<2x256xf32>
    %611 = arith.addf %607, %610 : vector<2x256xf32>
    %c140 = arith.constant 140 : index
    %612 = memref.load %arg1[%c140] : memref<144xf32, #tpu.memory_space<smem>>
    %613 = vector.broadcast %612 : f32 to vector<2x256xf32>
    %614 = arith.mulf %47, %613 : vector<2x256xf32>
    %615 = arith.addf %611, %614 : vector<2x256xf32>
    %c114 = arith.constant 114 : index
    %616 = memref.load %arg1[%c114] : memref<144xf32, #tpu.memory_space<smem>>
    %617 = vector.broadcast %616 : f32 to vector<2x256xf32>
    %618 = arith.mulf %49, %617 : vector<2x256xf32>
    %c123 = arith.constant 123 : index
    %619 = memref.load %arg1[%c123] : memref<144xf32, #tpu.memory_space<smem>>
    %620 = vector.broadcast %619 : f32 to vector<2x256xf32>
    %621 = arith.mulf %51, %620 : vector<2x256xf32>
    %622 = arith.addf %618, %621 : vector<2x256xf32>
    %c132 = arith.constant 132 : index
    %623 = memref.load %arg1[%c132] : memref<144xf32, #tpu.memory_space<smem>>
    %624 = vector.broadcast %623 : f32 to vector<2x256xf32>
    %625 = arith.mulf %53, %624 : vector<2x256xf32>
    %626 = arith.addf %622, %625 : vector<2x256xf32>
    %c141 = arith.constant 141 : index
    %627 = memref.load %arg1[%c141] : memref<144xf32, #tpu.memory_space<smem>>
    %628 = vector.broadcast %627 : f32 to vector<2x256xf32>
    %629 = arith.mulf %55, %628 : vector<2x256xf32>
    %630 = arith.addf %626, %629 : vector<2x256xf32>
    %c115 = arith.constant 115 : index
    %631 = memref.load %arg1[%c115] : memref<144xf32, #tpu.memory_space<smem>>
    %632 = vector.broadcast %631 : f32 to vector<2x256xf32>
    %633 = arith.mulf %57, %632 : vector<2x256xf32>
    %634 = arith.addf %630, %633 : vector<2x256xf32>
    %c124 = arith.constant 124 : index
    %635 = memref.load %arg1[%c124] : memref<144xf32, #tpu.memory_space<smem>>
    %636 = vector.broadcast %635 : f32 to vector<2x256xf32>
    %637 = arith.mulf %59, %636 : vector<2x256xf32>
    %638 = arith.addf %634, %637 : vector<2x256xf32>
    %c133 = arith.constant 133 : index
    %639 = memref.load %arg1[%c133] : memref<144xf32, #tpu.memory_space<smem>>
    %640 = vector.broadcast %639 : f32 to vector<2x256xf32>
    %641 = arith.mulf %61, %640 : vector<2x256xf32>
    %642 = arith.addf %638, %641 : vector<2x256xf32>
    %c142 = arith.constant 142 : index
    %643 = memref.load %arg1[%c142] : memref<144xf32, #tpu.memory_space<smem>>
    %644 = vector.broadcast %643 : f32 to vector<2x256xf32>
    %645 = arith.mulf %63, %644 : vector<2x256xf32>
    %646 = arith.addf %642, %645 : vector<2x256xf32>
    %c116 = arith.constant 116 : index
    %647 = memref.load %arg1[%c116] : memref<144xf32, #tpu.memory_space<smem>>
    %648 = vector.broadcast %647 : f32 to vector<2x256xf32>
    %649 = arith.mulf %65, %648 : vector<2x256xf32>
    %650 = arith.addf %646, %649 : vector<2x256xf32>
    %c125 = arith.constant 125 : index
    %651 = memref.load %arg1[%c125] : memref<144xf32, #tpu.memory_space<smem>>
    %652 = vector.broadcast %651 : f32 to vector<2x256xf32>
    %653 = arith.mulf %67, %652 : vector<2x256xf32>
    %654 = arith.addf %650, %653 : vector<2x256xf32>
    %c134 = arith.constant 134 : index
    %655 = memref.load %arg1[%c134] : memref<144xf32, #tpu.memory_space<smem>>
    %656 = vector.broadcast %655 : f32 to vector<2x256xf32>
    %657 = arith.mulf %69, %656 : vector<2x256xf32>
    %658 = arith.addf %654, %657 : vector<2x256xf32>
    %c143 = arith.constant 143 : index
    %659 = memref.load %arg1[%c143] : memref<144xf32, #tpu.memory_space<smem>>
    %660 = vector.broadcast %659 : f32 to vector<2x256xf32>
    %661 = arith.mulf %71, %660 : vector<2x256xf32>
    %662 = arith.addf %658, %661 : vector<2x256xf32>
    %663 = arith.addf %568, %615 : vector<2x256xf32>
    %c3_120 = arith.constant 3 : index
    %664 = memref.load %arg2[%c3_120] : memref<4xf32, #tpu.memory_space<smem>>
    %665 = vector.broadcast %664 : f32 to vector<2x256xf32>
    %666 = arith.addf %662, %665 : vector<2x256xf32>
    %667 = arith.addf %663, %666 : vector<2x256xf32>
    %668 = math.tanh %667 : vector<2x256xf32>
    %c0_121 = arith.constant 0 : index
    %c3_122 = arith.constant 3 : index
    %c0_123 = arith.constant 0 : index
    %669 = vector.load %arg3[%c0_121, %c3_122, %c0_123] : memref<2x4x256xf32, #tpu.memory_space<vmem>>, vector<2x1x256xf32>
    %670 = vector.shape_cast %669 : vector<2x1x256xf32> to vector<2x256xf32>
    %671 = vector.shape_cast %668 : vector<2x256xf32> to vector<2x1x256xf32>
    tpu.vector_store %arg3[%c0_121, %c3_122, %c0_123], %671 {strides = array<i32>} : memref<2x4x256xf32, #tpu.memory_space<vmem>>, vector<2x1x256xf32>,
    return
  }
}

</mosaic_0001>

<llo_original>
// kernel: tpu_custom_call.1
$region0: #{tpu_custom_call.1}
  #allocation0 [shape = 'u32[]', space=smem, size = 0x4, offset = 0x4, fixed_abs, tag = 'smem constant byte address 0x4 - core index']
  #allocation1 [shape = 'u32[144,128]{1,0:T(1,128)}', space=vmem, size = 0x12000, scoped, tag = 'internal scratch']
  %s0 = inlined_call_operand.hbm [shape: f32[2,4,290], index: 0, kind: input, shape index: {}]
  %s1 = inlined_call_operand.vmem [shape: f32[144], index: 1, kind: input, shape index: {}]
  %s2 = inlined_call_operand.vmem [shape: f32[4], index: 2, kind: input, shape index: {}]
  %s3 = inlined_call_operand.hbm [shape: f32[2,4,256], index: 3, kind: output, shape index: {}]
  %s4 = sld [smem:[#allocation0]]
  $region34: #{tpu_custom_call.1} parent=0
    _
  %s6 = ssub.s32 1, %s4
  %s7 = scalar_select 0, %s6, %s4
  $region1: #{tpu_custom_call.1} parent=0
    #allocation2 [shape = 'u8[12288]{0}', space=vmem, size = 0x3000, scoped, tag = 'input window, operand 0, single buffered']
    #allocation3 [shape = 's32[1]{0}', space=sflag, size = 0x4, scoped, tag = 'scoped memory for tpu_custom_call.1']
    #allocation4 [shape = 's32[1]{0}', space=sflag, size = 0x4, scoped, tag = 'scoped memory for tpu_custom_call.1']
    #allocation5 [shape = 's32[1]{0}', space=sflag, size = 0x4, scoped, tag = 'scoped memory for tpu_custom_call.1']
    #allocation6 [shape = 'u8[1024]{0}', space=smem, size = 0x400, scoped, tag = 'input window, operand 1, single buffered']
    #allocation7 [shape = 'u8[512]{0}', space=smem, size = 0x200, scoped, tag = 'input window, operand 2, single buffered']
    #allocation8 [shape = 's32[1]{0}', space=sflag, size = 0x4, scoped, tag = 'scoped memory for tpu_custom_call.1']
    #allocation9 [shape = 'u8[8192]{0}', space=vmem, size = 0x2000, scoped, tag = 'output window, operand 0, single buffered']
    %8 = vsyncpa [#allocation3], 0
    %9 = vsyncpa [#allocation5], 0
    %10 = vsyncpa [#allocation8], 0
    %11 = vsyncpa [#allocation4], 0
    // Predicated region
    $region2: #{tpu_custom_call.1} parent=1 // pred_check
      _
    $region3: #{tpu_custom_call.1} parent=1 // pred_check_branch
      %13 = sbr.rel (0) target = $region5
    $region4: #{tpu_custom_call.1} parent=1 // pred_region
      %s15 = ssub.s32 384, 384
      %16 = vsyncadd [#allocation3], %s15
      %s17 = sshll.u32 [#allocation2], 4
      %s18 = int_to_ptr.vmem [resolvable:$true] %s17
      %23 = dma.hbm_to_vmem [thread:$0]  %s0, 384, %s18, [#allocation3], 192, 192, 12
    $region5: #{tpu_custom_call.1} parent=1 // pred_fallthru
      _
    // Predicated region
    $region6: #{tpu_custom_call.1} parent=1 // pred_check
      _
    $region7: #{tpu_custom_call.1} parent=1 // pred_check_branch
      %25 = sbr.rel (0) target = $region9
    $region8: #{tpu_custom_call.1} parent=1 // pred_region
      %s27 = ssub.s32 32, 32
      %28 = vsyncadd [#allocation5], %s27
      %s30 = sshll.u32 %s1, 4
      %s31 = int_to_ptr.vmem [resolvable:$true] %s30
      %33 = dma.vmem_to_smem %s31, 32, [#allocation6], [#allocation5]
    $region9: #{tpu_custom_call.1} parent=1 // pred_fallthru
      _
    // Predicated region
    $region10: #{tpu_custom_call.1} parent=1 // pred_check
      _
    $region11: #{tpu_custom_call.1} parent=1 // pred_check_branch
      %35 = sbr.rel (0) target = $region13
    $region12: #{tpu_custom_call.1} parent=1 // pred_region
      %s37 = ssub.s32 16, 16
      %38 = vsyncadd [#allocation8], %s37
      %s40 = sshll.u32 %s2, 4
      %s41 = int_to_ptr.vmem [resolvable:$true] %s40
      %43 = dma.vmem_to_smem %s41, 16, [#allocation7], [#allocation8]
    $region13: #{tpu_custom_call.1} parent=1 // pred_fallthru
      _
    // Predicated region
    $region14: #{tpu_custom_call.1} parent=1 // pred_check
      _
    $region15: #{tpu_custom_call.1} parent=1 // pred_check_branch
      %45 = sbr.rel (0) target = $region17
    $region16: #{tpu_custom_call.1} parent=1 // pred_region
      %46 = dma.done [#allocation3], 384
    $region17: #{tpu_custom_call.1} parent=1 // pred_fallthru
      _
    // Predicated region
    $region18: #{tpu_custom_call.1} parent=1 // pred_check
      _
    $region19: #{tpu_custom_call.1} parent=1 // pred_check_branch
      %48 = sbr.rel (0) target = $region21
    $region20: #{tpu_custom_call.1} parent=1 // pred_region
      %49 = dma.done [#allocation5], 32
    $region21: #{tpu_custom_call.1} parent=1 // pred_fallthru
      _
    // Predicated region
    $region22: #{tpu_custom_call.1} parent=1 // pred_check
      _
    $region23: #{tpu_custom_call.1} parent=1 // pred_check_branch
      %51 = sbr.rel (0) target = $region25
    $region24: #{tpu_custom_call.1} parent=1 // pred_region
      %52 = dma.done [#allocation8], 16
    $region25: #{tpu_custom_call.1} parent=1 // pred_fallthru
      _
    %53 = sfence
    %v54 = vld [vmem:[#allocation2] ss:$4 sm:$0x3]
    %s55 = scalar_lea.vmem [#allocation2], 12
    %v56 = vld [vmem:[%s55] ss:$4 sm:$0x3]
    %s57 = scalar_lea.vmem [#allocation2], 1
    %v58 = vld [vmem:[%s57] ss:$4 sm:$0x3]
    %s59 = scalar_lea.vmem [#allocation2], 13
    %v60 = vld [vmem:[%s59] ss:$4 sm:$0x3]
    %s61 = scalar_lea.vmem [#allocation2], 2
    %v62 = vld [vmem:[%s61] ss:$4 sm:$0x3]
    %s63 = scalar_lea.vmem [#allocation2], 14
    %v64 = vld [vmem:[%s63] ss:$4 sm:$0x3]
    %s65 = scalar_lea.vmem [#allocation2], 3
    %v66 = vld [vmem:[%s65] ss:$4 sm:$0x3]
    %s67 = scalar_lea.vmem [#allocation2], 15
    %v68 = vld [vmem:[%s67] ss:$4 sm:$0x3]
    %v69 = vld [vmem:[#allocation2] ss:$4 sm:$0x7]
    %v70 = vld [vmem:[%s55] ss:$4 sm:$0x7]
    %v71 = vld [vmem:[%s57] ss:$4 sm:$0x7]
    %v72 = vld [vmem:[%s59] ss:$4 sm:$0x7]
    %v73 = vld [vmem:[%s61] ss:$4 sm:$0x7]
    %v74 = vld [vmem:[%s63] ss:$4 sm:$0x7]
    %v75 = vld [vmem:[%s65] ss:$4 sm:$0x7]
    %v76 = vld [vmem:[%s67] ss:$4 sm:$0x7]
    %s77 = sld [smem:[#allocation6]]
    %v78 = vstv %s77
    %v79 = vmul.f32 %v54, %v78
    %v80 = vmul.f32 %v56, %v78
    %s81 = sld [smem:[#allocation6 + $0x9]]
    %v82 = vstv %s81
    %v83 = vmul.f32 %v58, %v82
    %v84 = vmul.f32 %v60, %v82
    %v85 = vadd.f32 %v79, %v83
    %v86 = vadd.f32 %v80, %v84
    %s87 = sld [smem:[#allocation6 + $0x12]]
    %v88 = vstv %s87
    %v89 = vmul.f32 %v62, %v88
    %v90 = vmul.f32 %v64, %v88
    %v91 = vadd.f32 %v85, %v89
    %v92 = vadd.f32 %v86, %v90
    %s93 = sld [smem:[#allocation6 + $0x1b]]
    %v94 = vstv %s93
    %v95 = vmul.f32 %v66, %v94
    %v96 = vmul.f32 %v68, %v94
    %v97 = vadd.f32 %v91, %v95
    %v98 = vadd.f32 %v92, %v96
    %s99 = sld [smem:[#allocation6 + $0x1]]
    %v100 = vstv %s99
    %v101 = vmul.f32 %v69, %v100
    %v102 = vmul.f32 %v70, %v100
    %105 = vrot.lane.b32.xlu0 %v101, 127
    %v106 = vpop.permute.xlu0 %105
    %107 = vrot.lane.b32.xlu0 %v102, 127
    %v108 = vpop.permute.xlu0 %107
    %v109 = vrot.slane %v106, 1
    %v110 = vrot.slane %v108, 1
    %vm111 = vcmask 1039360
    %v112 = vsel %vm111, %v106, %v109
    %v113 = vsel %vm111, %v108, %v110
    %v116 = vadd.f32 %v97, %v112
    %v117 = vadd.f32 %v98, %v113
    %s118 = sld [smem:[#allocation6 + $0xa]]
    %v119 = vstv %s118
    %v120 = vmul.f32 %v71, %v119
    %v121 = vmul.f32 %v72, %v119
    %124 = vrot.lane.b32.xlu0 %v120, 127
    %v125 = vpop.permute.xlu0 %124
    %126 = vrot.lane.b32.xlu0 %v121, 127
    %v127 = vpop.permute.xlu0 %126
    %v128 = vrot.slane %v125, 1
    %v129 = vrot.slane %v127, 1
    %v130 = vsel %vm111, %v125, %v128
    %v131 = vsel %vm111, %v127, %v129
    %v134 = vadd.f32 %v116, %v130
    %v135 = vadd.f32 %v117, %v131
    %s136 = sld [smem:[#allocation6 + $0x13]]
    %v137 = vstv %s136
    %v138 = vmul.f32 %v73, %v137
    %v139 = vmul.f32 %v74, %v137
    %142 = vrot.lane.b32.xlu0 %v138, 127
    %v143 = vpop.permute.xlu0 %142
    %144 = vrot.lane.b32.xlu0 %v139, 127
    %v145 = vpop.permute.xlu0 %144
    %v146 = vrot.slane %v143, 1
    %v147 = vrot.slane %v145, 1
    %v148 = vsel %vm111, %v143, %v146
    %v149 = vsel %vm111, %v145, %v147
    %v152 = vadd.f32 %v134, %v148
    %v153 = vadd.f32 %v135, %v149
    %s154 = sld [smem:[#allocation6 + $0x1c]]
    %v155 = vstv %s154
    %v156 = vmul.f32 %v75, %v155
    %v157 = vmul.f32 %v76, %v155
    %160 = vrot.lane.b32.xlu0 %v156, 127
    %v161 = vpop.permute.xlu0 %160
    %162 = vrot.lane.b32.xlu0 %v157, 127
    %v163 = vpop.permute.xlu0 %162
    %v164 = vrot.slane %v161, 1
    %v165 = vrot.slane %v163, 1
    %v166 = vsel %vm111, %v161, %v164
    %v167 = vsel %vm111, %v163, %v165
    %v170 = vadd.f32 %v152, %v166
    %v171 = vadd.f32 %v153, %v167
    %s172 = sld [smem:[#allocation6 + $0x2]]
    %v173 = vstv %s172
    %v174 = vmul.f32 %v69, %v173
    %v175 = vmul.f32 %v70, %v173
    %178 = vrot.lane.b32.xlu0 %v174, 126
    %v179 = vpop.permute.xlu0 %178
    %180 = vrot.lane.b32.xlu0 %v175, 126
    %v181 = vpop.permute.xlu0 %180
    %v182 = vrot.slane %v179, 1
    %v183 = vrot.slane %v181, 1
    %vm184 = vcmask 1031168
    %v185 = vsel %vm184, %v179, %v182
    %v186 = vsel %vm184, %v181, %v183
    %v189 = vadd.f32 %v170, %v185
    %v190 = vadd.f32 %v171, %v186
    %s191 = sld [smem:[#allocation6 + $0xb]]
    %v192 = vstv %s191
    %v193 = vmul.f32 %v71, %v192
    %v194 = vmul.f32 %v72, %v192
    %197 = vrot.lane.b32.xlu0 %v193, 126
    %v198 = vpop.permute.xlu0 %197
    %199 = vrot.lane.b32.xlu0 %v194, 126
    %v200 = vpop.permute.xlu0 %199
    %v201 = vrot.slane %v198, 1
    %v202 = vrot.slane %v200, 1
    %v203 = vsel %vm184, %v198, %v201
    %v204 = vsel %vm184, %v200, %v202
    %v207 = vadd.f32 %v189, %v203
    %v208 = vadd.f32 %v190, %v204
    %s209 = sld [smem:[#allocation6 + $0x14]]
    %v210 = vstv %s209
    %v211 = vmul.f32 %v73, %v210
    %v212 = vmul.f32 %v74, %v210
    %215 = vrot.lane.b32.xlu0 %v211, 126
    %v216 = vpop.permute.xlu0 %215
    %217 = vrot.lane.b32.xlu0 %v212, 126
    %v218 = vpop.permute.xlu0 %217
    %v219 = vrot.slane %v216, 1
    %v220 = vrot.slane %v218, 1
    %v221 = vsel %vm184, %v216, %v219
    %v222 = vsel %vm184, %v218, %v220
    %v225 = vadd.f32 %v207, %v221
    %v226 = vadd.f32 %v208, %v222
    %s227 = sld [smem:[#allocation6 + $0x1d]]
    %v228 = vstv %s227
    %v229 = vmul.f32 %v75, %v228
    %v230 = vmul.f32 %v76, %v228
    %233 = vrot.lane.b32.xlu0 %v229, 126
    %v234 = vpop.permute.xlu0 %233
    %235 = vrot.lane.b32.xlu0 %v230, 126
    %v236 = vpop.permute.xlu0 %235
    %v237 = vrot.slane %v234, 1
    %v238 = vrot.slane %v236, 1
    %v239 = vsel %vm184, %v234, %v237
    %v240 = vsel %vm184, %v236, %v238
    %v243 = vadd.f32 %v225, %v239
    %v244 = vadd.f32 %v226, %v240
    %s245 = sld [smem:[#allocation6 + $0x3]]
    %v246 = vstv %s245
    %v247 = vmul.f32 %v69, %v246
    %v248 = vmul.f32 %v70, %v246
    %s249 = sld [smem:[#allocation6 + $0xc]]
    %v250 = vstv %s249
    %v251 = vmul.f32 %v71, %v250
    %v252 = vmul.f32 %v72, %v250
    %v253 = vadd.f32 %v247, %v251
    %v254 = vadd.f32 %v248, %v252
    %s255 = sld [smem:[#allocation6 + $0x15]]
    %v256 = vstv %s255
    %v257 = vmul.f32 %v73, %v256
    %v258 = vmul.f32 %v74, %v256
    %v259 = vadd.f32 %v253, %v257
    %v260 = vadd.f32 %v254, %v258
    %s261 = sld [smem:[#allocation6 + $0x1e]]
    %v262 = vstv %s261
    %v263 = vmul.f32 %v75, %v262
    %v264 = vmul.f32 %v76, %v262
    %v265 = vadd.f32 %v259, %v263
    %v266 = vadd.f32 %v260, %v264
    %s267 = sld [smem:[#allocation6 + $0x4]]
    %v268 = vstv %s267
    %v269 = vmul.f32 %v69, %v268
    %v270 = vmul.f32 %v70, %v268
    %273 = vrot.lane.b32.xlu0 %v269, 127
    %v274 = vpop.permute.xlu0 %273
    %275 = vrot.lane.b32.xlu0 %v270, 127
    %v276 = vpop.permute.xlu0 %275
    %v277 = vrot.slane %v274, 1
    %v278 = vrot.slane %v276, 1
    %v279 = vsel %vm111, %v274, %v277
    %v280 = vsel %vm111, %v276, %v278
    %v283 = vadd.f32 %v265, %v279
    %v284 = vadd.f32 %v266, %v280
    %s285 = sld [smem:[#allocation6 + $0xd]]
    %v286 = vstv %s285
    %v287 = vmul.f32 %v71, %v286
    %v288 = vmul.f32 %v72, %v286
    %291 = vrot.lane.b32.xlu0 %v287, 127
    %v292 = vpop.permute.xlu0 %291
    %293 = vrot.lane.b32.xlu0 %v288, 127
    %v294 = vpop.permute.xlu0 %293
    %v295 = vrot.slane %v292, 1
    %v296 = vrot.slane %v294, 1
    %v297 = vsel %vm111, %v292, %v295
    %v298 = vsel %vm111, %v294, %v296
    %v301 = vadd.f32 %v283, %v297
    %v302 = vadd.f32 %v284, %v298
    %s303 = sld [smem:[#allocation6 + $0x16]]
    %v304 = vstv %s303
    %v305 = vmul.f32 %v73, %v304
    %v306 = vmul.f32 %v74, %v304
    %309 = vrot.lane.b32.xlu0 %v305, 127
    %v310 = vpop.permute.xlu0 %309
    %311 = vrot.lane.b32.xlu0 %v306, 127
    %v312 = vpop.permute.xlu0 %311
    %v313 = vrot.slane %v310, 1
    %v314 = vrot.slane %v312, 1
    %v315 = vsel %vm111, %v310, %v313
    %v316 = vsel %vm111, %v312, %v314
    %v319 = vadd.f32 %v301, %v315
    %v320 = vadd.f32 %v302, %v316
    %s321 = sld [smem:[#allocation6 + $0x1f]]
    %v322 = vstv %s321
    %v323 = vmul.f32 %v75, %v322
    %v324 = vmul.f32 %v76, %v322
    %327 = vrot.lane.b32.xlu0 %v323, 127
    %v328 = vpop.permute.xlu0 %327
    %329 = vrot.lane.b32.xlu0 %v324, 127
    %v330 = vpop.permute.xlu0 %329
    %v331 = vrot.slane %v328, 1
    %v332 = vrot.slane %v330, 1
    %v333 = vsel %vm111, %v328, %v331
    %v334 = vsel %vm111, %v330, %v332
    %v337 = vadd.f32 %v319, %v333
    %v338 = vadd.f32 %v320, %v334
    %s339 = sld [smem:[#allocation6 + $0x5]]
    %v340 = vstv %s339
    %v341 = vmul.f32 %v69, %v340
    %v342 = vmul.f32 %v70, %v340
    %345 = vrot.lane.b32.xlu0 %v341, 126
    %v346 = vpop.permute.xlu0 %345
    %347 = vrot.lane.b32.xlu0 %v342, 126
    %v348 = vpop.permute.xlu0 %347
    %v349 = vrot.slane %v346, 1
    %v350 = vrot.slane %v348, 1
    %v351 = vsel %vm184, %v346, %v349
    %v352 = vsel %vm184, %v348, %v350
    %v355 = vadd.f32 %v337, %v351
    %v356 = vadd.f32 %v338, %v352
    %s357 = sld [smem:[#allocation6 + $0xe]]
    %v358 = vstv %s357
    %v359 = vmul.f32 %v71, %v358
    %v360 = vmul.f32 %v72, %v358
    %363 = vrot.lane.b32.xlu0 %v359, 126
    %v364 = vpop.permute.xlu0 %363
    %365 = vrot.lane.b32.xlu0 %v360, 126
    %v366 = vpop.permute.xlu0 %365
    %v367 = vrot.slane %v364, 1
    %v368 = vrot.slane %v366, 1
    %v369 = vsel %vm184, %v364, %v367
    %v370 = vsel %vm184, %v366, %v368
    %v373 = vadd.f32 %v355, %v369
    %v374 = vadd.f32 %v356, %v370
    %s375 = sld [smem:[#allocation6 + $0x17]]
    %v376 = vstv %s375
    %v377 = vmul.f32 %v73, %v376
    %v378 = vmul.f32 %v74, %v376
    %381 = vrot.lane.b32.xlu0 %v377, 126
    %v382 = vpop.permute.xlu0 %381
    %383 = vrot.lane.b32.xlu0 %v378, 126
    %v384 = vpop.permute.xlu0 %383
    %v385 = vrot.slane %v382, 1
    %v386 = vrot.slane %v384, 1
    %v387 = vsel %vm184, %v382, %v385
    %v388 = vsel %vm184, %v384, %v386
    %v391 = vadd.f32 %v373, %v387
    %v392 = vadd.f32 %v374, %v388
    %s393 = sld [smem:[#allocation6 + $0x20]]
    %v394 = vstv %s393
    %v395 = vmul.f32 %v75, %v394
    %v396 = vmul.f32 %v76, %v394
    %399 = vrot.lane.b32.xlu0 %v395, 126
    %v400 = vpop.permute.xlu0 %399
    %401 = vrot.lane.b32.xlu0 %v396, 126
    %v402 = vpop.permute.xlu0 %401
    %v403 = vrot.slane %v400, 1
    %v404 = vrot.slane %v402, 1
    %v405 = vsel %vm184, %v400, %v403
    %v406 = vsel %vm184, %v402, %v404
    %v409 = vadd.f32 %v391, %v405
    %v410 = vadd.f32 %v392, %v406
    %s411 = sld [smem:[#allocation6 + $0x6]]
    %v412 = vstv %s411
    %v413 = vmul.f32 %v69, %v412
    %v414 = vmul.f32 %v70, %v412
    %s415 = sld [smem:[#allocation6 + $0xf]]
    %v416 = vstv %s415
    %v417 = vmul.f32 %v71, %v416
    %v418 = vmul.f32 %v72, %v416
    %v419 = vadd.f32 %v413, %v417
    %v420 = vadd.f32 %v414, %v418
    %s421 = sld [smem:[#allocation6 + $0x18]]
    %v422 = vstv %s421
    %v423 = vmul.f32 %v73, %v422
    %v424 = vmul.f32 %v74, %v422
    %v425 = vadd.f32 %v419, %v423
    %v426 = vadd.f32 %v420, %v424
    %s427 = sld [smem:[#allocation6 + $0x21]]
    %v428 = vstv %s427
    %v429 = vmul.f32 %v75, %v428
    %v430 = vmul.f32 %v76, %v428
    %v431 = vadd.f32 %v425, %v429
    %v432 = vadd.f32 %v426, %v430
    %s433 = sld [smem:[#allocation6 + $0x7]]
    %v434 = vstv %s433
    %v435 = vmul.f32 %v69, %v434
    %v436 = vmul.f32 %v70, %v434
    %439 = vrot.lane.b32.xlu0 %v435, 127
    %v440 = vpop.permute.xlu0 %439
    %441 = vrot.lane.b32.xlu0 %v436, 127
    %v442 = vpop.permute.xlu0 %441
    %v443 = vrot.slane %v440, 1
    %v444 = vrot.slane %v442, 1
    %v445 = vsel %vm111, %v440, %v443
    %v446 = vsel %vm111, %v442, %v444
    %v449 = vadd.f32 %v431, %v445
    %v450 = vadd.f32 %v432, %v446
    %s451 = sld [smem:[#allocation6 + $0x10]]
    %v452 = vstv %s451
    %v453 = vmul.f32 %v71, %v452
    %v454 = vmul.f32 %v72, %v452
    %457 = vrot.lane.b32.xlu0 %v453, 127
    %v458 = vpop.permute.xlu0 %457
    %459 = vrot.lane.b32.xlu0 %v454, 127
    %v460 = vpop.permute.xlu0 %459
    %v461 = vrot.slane %v458, 1
    %v462 = vrot.slane %v460, 1
    %v463 = vsel %vm111, %v458, %v461
    %v464 = vsel %vm111, %v460, %v462
    %v467 = vadd.f32 %v449, %v463
    %v468 = vadd.f32 %v450, %v464
    %s469 = sld [smem:[#allocation6 + $0x19]]
    %v470 = vstv %s469
    %v471 = vmul.f32 %v73, %v470
    %v472 = vmul.f32 %v74, %v470
    %475 = vrot.lane.b32.xlu0 %v471, 127
    %v476 = vpop.permute.xlu0 %475
    %477 = vrot.lane.b32.xlu0 %v472, 127
    %v478 = vpop.permute.xlu0 %477
    %v479 = vrot.slane %v476, 1
    %v480 = vrot.slane %v478, 1
    %v481 = vsel %vm111, %v476, %v479
    %v482 = vsel %vm111, %v478, %v480
    %v485 = vadd.f32 %v467, %v481
    %v486 = vadd.f32 %v468, %v482
    %s487 = sld [smem:[#allocation6 + $0x22]]
    %v488 = vstv %s487
    %v489 = vmul.f32 %v75, %v488
    %v490 = vmul.f32 %v76, %v488
    %493 = vrot.lane.b32.xlu0 %v489, 127
    %v494 = vpop.permute.xlu0 %493
    %495 = vrot.lane.b32.xlu0 %v490, 127
    %v496 = vpop.permute.xlu0 %495
    %v497 = vrot.slane %v494, 1
    %v498 = vrot.slane %v496, 1
    %v499 = vsel %vm111, %v494, %v497
    %v500 = vsel %vm111, %v496, %v498
    %v503 = vadd.f32 %v485, %v499
    %v504 = vadd.f32 %v486, %v500
    %s505 = sld [smem:[#allocation6 + $0x8]]
    %v506 = vstv %s505
    %v507 = vmul.f32 %v69, %v506
    %v508 = vmul.f32 %v70, %v506
    %511 = vrot.lane.b32.xlu0 %v507, 126
    %v512 = vpop.permute.xlu0 %511
    %513 = vrot.lane.b32.xlu0 %v508, 126
    %v514 = vpop.permute.xlu0 %513
    %v515 = vrot.slane %v512, 1
    %v516 = vrot.slane %v514, 1
    %v517 = vsel %vm184, %v512, %v515
    %v518 = vsel %vm184, %v514, %v516
    %v521 = vadd.f32 %v503, %v517
    %v522 = vadd.f32 %v504, %v518
    %s523 = sld [smem:[#allocation6 + $0x11]]
    %v524 = vstv %s523
    %v525 = vmul.f32 %v71, %v524
    %v526 = vmul.f32 %v72, %v524
    %529 = vrot.lane.b32.xlu0 %v525, 126
    %v530 = vpop.permute.xlu0 %529
    %531 = vrot.lane.b32.xlu0 %v526, 126
    %v532 = vpop.permute.xlu0 %531
    %v533 = vrot.slane %v530, 1
    %v534 = vrot.slane %v532, 1
    %v535 = vsel %vm184, %v530, %v533
    %v536 = vsel %vm184, %v532, %v534
    %v539 = vadd.f32 %v521, %v535
    %v540 = vadd.f32 %v522, %v536
    %s541 = sld [smem:[#allocation6 + $0x1a]]
    %v542 = vstv %s541
    %v543 = vmul.f32 %v73, %v542
    %v544 = vmul.f32 %v74, %v542
    %547 = vrot.lane.b32.xlu0 %v543, 126
    %v548 = vpop.permute.xlu0 %547
    %549 = vrot.lane.b32.xlu0 %v544, 126
    %v550 = vpop.permute.xlu0 %549
    %v551 = vrot.slane %v548, 1
    %v552 = vrot.slane %v550, 1
    %v553 = vsel %vm184, %v548, %v551
    %v554 = vsel %vm184, %v550, %v552
    %v557 = vadd.f32 %v539, %v553
    %v558 = vadd.f32 %v540, %v554
    %s559 = sld [smem:[#allocation6 + $0x23]]
    %v560 = vstv %s559
    %v561 = vmul.f32 %v75, %v560
    %v562 = vmul.f32 %v76, %v560
    %565 = vrot.lane.b32.xlu0 %v561, 126
    %v566 = vpop.permute.xlu0 %565
    %567 = vrot.lane.b32.xlu0 %v562, 126
    %v568 = vpop.permute.xlu0 %567
    %v569 = vrot.slane %v566, 1
    %v570 = vrot.slane %v568, 1
    %v571 = vsel %vm184, %v566, %v569
    %v572 = vsel %vm184, %v568, %v570
    %v575 = vadd.f32 %v557, %v571
    %v576 = vadd.f32 %v558, %v572
    %579 = vrot.lane.b32.xlu0 %v409, 112
    %v580 = vpop.permute.xlu0 %579
    %581 = vrot.lane.b32.xlu0 %v410, 112
    %v582 = vpop.permute.xlu0 %581
    %v583 = vrot.slane %v580, 1
    %v584 = vrot.slane %v582, 1
    %vm585 = vcmask 916480
    %v586 = vsel %vm585, %v580, %v583
    %v587 = vsel %vm585, %v582, %v584
    %v590 = vadd.f32 %v243, %v586
    %v591 = vadd.f32 %v244, %v587
    %s592 = sld [smem:[#allocation7]]
    %v593 = vstv %s592
    %v594 = vadd.f32 %v575, %v593
    %v595 = vadd.f32 %v576, %v593
    %598 = vrot.lane.b32.xlu0 %v594, 96
    %v599 = vpop.permute.xlu0 %598
    %600 = vrot.lane.b32.xlu0 %v595, 96
    %v601 = vpop.permute.xlu0 %600
    %v602 = vrot.slane %v599, 1
    %v603 = vrot.slane %v601, 1
    %vm604 = vcmask 785408
    %v605 = vsel %vm604, %v599, %v602
    %v606 = vsel %vm604, %v601, %v603
    %v609 = vadd.f32 %v590, %v605
    %v610 = vadd.f32 %v591, %v606
    %v611 = vtanh.pop %v609
    %v612 = vtanh.pop %v610
    %v613 = vlaneseq
    %vm614 = vcmp.ge.s32.totalorder %v613, 0
    %vm615 = vcmp.lt.s32.totalorder %v613, 256
    %vm616 = vmand %vm614, %vm615
    %617 = vst.msk [vmem:[#allocation9] ss:$4 sm:$0x3] %vm616, %v611
    %s618 = scalar_lea.vmem [#allocation9], 8
    %619 = vst.msk [vmem:[%s618] ss:$4 sm:$0x3] %vm616, %v612
    %s620 = sld [smem:[#allocation6 + $0x24]]
    %v621 = vstv %s620
    %v622 = vmul.f32 %v54, %v621
    %v623 = vmul.f32 %v56, %v621
    %s624 = sld [smem:[#allocation6 + $0x2d]]
    %v625 = vstv %s624
    %v626 = vmul.f32 %v58, %v625
    %v627 = vmul.f32 %v60, %v625
    %v628 = vadd.f32 %v622, %v626
    %v629 = vadd.f32 %v623, %v627
    %s630 = sld [smem:[#allocation6 + $0x36]]
    %v631 = vstv %s630
    %v632 = vmul.f32 %v62, %v631
    %v633 = vmul.f32 %v64, %v631
    %v634 = vadd.f32 %v628, %v632
    %v635 = vadd.f32 %v629, %v633
    %s636 = sld [smem:[#allocation6 + $0x3f]]
    %v637 = vstv %s636
    %v638 = vmul.f32 %v66, %v637
    %v639 = vmul.f32 %v68, %v637
    %v640 = vadd.f32 %v634, %v638
    %v641 = vadd.f32 %v635, %v639
    %s642 = sld [smem:[#allocation6 + $0x25]]
    %v643 = vstv %s642
    %v644 = vmul.f32 %v69, %v643
    %v645 = vmul.f32 %v70, %v643
    %648 = vrot.lane.b32.xlu0 %v644, 127
    %v649 = vpop.permute.xlu0 %648
    %650 = vrot.lane.b32.xlu0 %v645, 127
    %v651 = vpop.permute.xlu0 %650
    %v652 = vrot.slane %v649, 1
    %v653 = vrot.slane %v651, 1
    %v654 = vsel %vm111, %v649, %v652
    %v655 = vsel %vm111, %v651, %v653
    %v658 = vadd.f32 %v640, %v654
    %v659 = vadd.f32 %v641, %v655
    %s660 = sld [smem:[#allocation6 + $0x2e]]
    %v661 = vstv %s660
    %v662 = vmul.f32 %v71, %v661
    %v663 = vmul.f32 %v72, %v661
    %666 = vrot.lane.b32.xlu0 %v662, 127
    %v667 = vpop.permute.xlu0 %666
    %668 = vrot.lane.b32.xlu0 %v663, 127
    %v669 = vpop.permute.xlu0 %668
    %v670 = vrot.slane %v667, 1
    %v671 = vrot.slane %v669, 1
    %v672 = vsel %vm111, %v667, %v670
    %v673 = vsel %vm111, %v669, %v671
    %v676 = vadd.f32 %v658, %v672
    %v677 = vadd.f32 %v659, %v673
    %s678 = sld [smem:[#allocation6 + $0x37]]
    %v679 = vstv %s678
    %v680 = vmul.f32 %v73, %v679
    %v681 = vmul.f32 %v74, %v679
    %684 = vrot.lane.b32.xlu0 %v680, 127
    %v685 = vpop.permute.xlu0 %684
    %686 = vrot.lane.b32.xlu0 %v681, 127
    %v687 = vpop.permute.xlu0 %686
    %v688 = vrot.slane %v685, 1
    %v689 = vrot.slane %v687, 1
    %v690 = vsel %vm111, %v685, %v688
    %v691 = vsel %vm111, %v687, %v689
    %v694 = vadd.f32 %v676, %v690
    %v695 = vadd.f32 %v677, %v691
    %s696 = sld [smem:[#allocation6 + $0x40]]
    %v697 = vstv %s696
    %v698 = vmul.f32 %v75, %v697
    %v699 = vmul.f32 %v76, %v697
    %702 = vrot.lane.b32.xlu0 %v698, 127
    %v703 = vpop.permute.xlu0 %702
    %704 = vrot.lane.b32.xlu0 %v699, 127
    %v705 = vpop.permute.xlu0 %704
    %v706 = vrot.slane %v703, 1
    %v707 = vrot.slane %v705, 1
    %v708 = vsel %vm111, %v703, %v706
    %v709 = vsel %vm111, %v705, %v707
    %v712 = vadd.f32 %v694, %v708
    %v713 = vadd.f32 %v695, %v709
    %s714 = sld [smem:[#allocation6 + $0x26]]
    %v715 = vstv %s714
    %v716 = vmul.f32 %v69, %v715
    %v717 = vmul.f32 %v70, %v715
    %720 = vrot.lane.b32.xlu0 %v716, 126
    %v721 = vpop.permute.xlu0 %720
    %722 = vrot.lane.b32.xlu0 %v717, 126
    %v723 = vpop.permute.xlu0 %722
    %v724 = vrot.slane %v721, 1
    %v725 = vrot.slane %v723, 1
    %v726 = vsel %vm184, %v721, %v724
    %v727 = vsel %vm184, %v723, %v725
    %v730 = vadd.f32 %v712, %v726
    %v731 = vadd.f32 %v713, %v727
    %s732 = sld [smem:[#allocation6 + $0x2f]]
    %v733 = vstv %s732
    %v734 = vmul.f32 %v71, %v733
    %v735 = vmul.f32 %v72, %v733
    %738 = vrot.lane.b32.xlu0 %v734, 126
    %v739 = vpop.permute.xlu0 %738
    %740 = vrot.lane.b32.xlu0 %v735, 126
    %v741 = vpop.permute.xlu0 %740
    %v742 = vrot.slane %v739, 1
    %v743 = vrot.slane %v741, 1
    %v744 = vsel %vm184, %v739, %v742
    %v745 = vsel %vm184, %v741, %v743
    %v748 = vadd.f32 %v730, %v744
    %v749 = vadd.f32 %v731, %v745
    %s750 = sld [smem:[#allocation6 + $0x38]]
    %v751 = vstv %s750
    %v752 = vmul.f32 %v73, %v751
    %v753 = vmul.f32 %v74, %v751
    %756 = vrot.lane.b32.xlu0 %v752, 126
    %v757 = vpop.permute.xlu0 %756
    %758 = vrot.lane.b32.xlu0 %v753, 126
    %v759 = vpop.permute.xlu0 %758
    %v760 = vrot.slane %v757, 1
    %v761 = vrot.slane %v759, 1
    %v762 = vsel %vm184, %v757, %v760
    %v763 = vsel %vm184, %v759, %v761
    %v766 = vadd.f32 %v748, %v762
    %v767 = vadd.f32 %v749, %v763
    %s768 = sld [smem:[#allocation6 + $0x41]]
    %v769 = vstv %s768
    %v770 = vmul.f32 %v75, %v769
    %v771 = vmul.f32 %v76, %v769
    %774 = vrot.lane.b32.xlu0 %v770, 126
    %v775 = vpop.permute.xlu0 %774
    %776 = vrot.lane.b32.xlu0 %v771, 126
    %v777 = vpop.permute.xlu0 %776
    %v778 = vrot.slane %v775, 1
    %v779 = vrot.slane %v777, 1
    %v780 = vsel %vm184, %v775, %v778
    %v781 = vsel %vm184, %v777, %v779
    %v784 = vadd.f32 %v766, %v780
    %v785 = vadd.f32 %v767, %v781
    %s786 = sld [smem:[#allocation6 + $0x27]]
    %v787 = vstv %s786
    %v788 = vmul.f32 %v69, %v787
    %v789 = vmul.f32 %v70, %v787
    %s790 = sld [smem:[#allocation6 + $0x30]]
    %v791 = vstv %s790
    %v792 = vmul.f32 %v71, %v791
    %v793 = vmul.f32 %v72, %v791
    %v794 = vadd.f32 %v788, %v792
    %v795 = vadd.f32 %v789, %v793
    %s796 = sld [smem:[#allocation6 + $0x39]]
    %v797 = vstv %s796
    %v798 = vmul.f32 %v73, %v797
    %v799 = vmul.f32 %v74, %v797
    %v800 = vadd.f32 %v794, %v798
    %v801 = vadd.f32 %v795, %v799
    %s802 = sld [smem:[#allocation6 + $0x42]]
    %v803 = vstv %s802
    %v804 = vmul.f32 %v75, %v803
    %v805 = vmul.f32 %v76, %v803
    %v806 = vadd.f32 %v800, %v804
    %v807 = vadd.f32 %v801, %v805
    %s808 = sld [smem:[#allocation6 + $0x28]]
    %v809 = vstv %s808
    %v810 = vmul.f32 %v69, %v809
    %v811 = vmul.f32 %v70, %v809
    %814 = vrot.lane.b32.xlu0 %v810, 127
    %v815 = vpop.permute.xlu0 %814
    %816 = vrot.lane.b32.xlu0 %v811, 127
    %v817 = vpop.permute.xlu0 %816
    %v818 = vrot.slane %v815, 1
    %v819 = vrot.slane %v817, 1
    %v820 = vsel %vm111, %v815, %v818
    %v821 = vsel %vm111, %v817, %v819
    %v824 = vadd.f32 %v806, %v820
    %v825 = vadd.f32 %v807, %v821
    %s826 = sld [smem:[#allocation6 + $0x31]]
    %v827 = vstv %s826
    %v828 = vmul.f32 %v71, %v827
    %v829 = vmul.f32 %v72, %v827
    %832 = vrot.lane.b32.xlu0 %v828, 127
    %v833 = vpop.permute.xlu0 %832
    %834 = vrot.lane.b32.xlu0 %v829, 127
    %v835 = vpop.permute.xlu0 %834
    %v836 = vrot.slane %v833, 1
    %v837 = vrot.slane %v835, 1
    %v838 = vsel %vm111, %v833, %v836
    %v839 = vsel %vm111, %v835, %v837
    %v842 = vadd.f32 %v824, %v838
    %v843 = vadd.f32 %v825, %v839
    %s844 = sld [smem:[#allocation6 + $0x3a]]
    %v845 = vstv %s844
    %v846 = vmul.f32 %v73, %v845
    %v847 = vmul.f32 %v74, %v845
    %850 = vrot.lane.b32.xlu0 %v846, 127
    %v851 = vpop.permute.xlu0 %850
    %852 = vrot.lane.b32.xlu0 %v847, 127
    %v853 = vpop.permute.xlu0 %852
    %v854 = vrot.slane %v851, 1
    %v855 = vrot.slane %v853, 1
    %v856 = vsel %vm111, %v851, %v854
    %v857 = vsel %vm111, %v853, %v855
    %v860 = vadd.f32 %v842, %v856
    %v861 = vadd.f32 %v843, %v857
    %s862 = sld [smem:[#allocation6 + $0x43]]
    %v863 = vstv %s862
    %v864 = vmul.f32 %v75, %v863
    %v865 = vmul.f32 %v76, %v863
    %868 = vrot.lane.b32.xlu0 %v864, 127
    %v869 = vpop.permute.xlu0 %868
    %870 = vrot.lane.b32.xlu0 %v865, 127
    %v871 = vpop.permute.xlu0 %870
    %v872 = vrot.slane %v869, 1
    %v873 = vrot.slane %v871, 1
    %v874 = vsel %vm111, %v869, %v872
    %v875 = vsel %vm111, %v871, %v873
    %v878 = vadd.f32 %v860, %v874
    %v879 = vadd.f32 %v861, %v875
    %s880 = sld [smem:[#allocation6 + $0x29]]
    %v881 = vstv %s880
    %v882 = vmul.f32 %v69, %v881
    %v883 = vmul.f32 %v70, %v881
    %886 = vrot.lane.b32.xlu0 %v882, 126
    %v887 = vpop.permute.xlu0 %886
    %888 = vrot.lane.b32.xlu0 %v883, 126
    %v889 = vpop.permute.xlu0 %888
    %v890 = vrot.slane %v887, 1
    %v891 = vrot.slane %v889, 1
    %v892 = vsel %vm184, %v887, %v890
    %v893 = vsel %vm184, %v889, %v891
    %v896 = vadd.f32 %v878, %v892
    %v897 = vadd.f32 %v879, %v893
    %s898 = sld [smem:[#allocation6 + $0x32]]
    %v899 = vstv %s898
    %v900 = vmul.f32 %v71, %v899
    %v901 = vmul.f32 %v72, %v899
    %904 = vrot.lane.b32.xlu0 %v900, 126
    %v905 = vpop.permute.xlu0 %904
    %906 = vrot.lane.b32.xlu0 %v901, 126
    %v907 = vpop.permute.xlu0 %906
    %v908 = vrot.slane %v905, 1
    %v909 = vrot.slane %v907, 1
    %v910 = vsel %vm184, %v905, %v908
    %v911 = vsel %vm184, %v907, %v909
    %v914 = vadd.f32 %v896, %v910
    %v915 = vadd.f32 %v897, %v911
    %s916 = sld [smem:[#allocation6 + $0x3b]]
    %v917 = vstv %s916
    %v918 = vmul.f32 %v73, %v917
    %v919 = vmul.f32 %v74, %v917
    %922 = vrot.lane.b32.xlu0 %v918, 126
    %v923 = vpop.permute.xlu0 %922
    %924 = vrot.lane.b32.xlu0 %v919, 126
    %v925 = vpop.permute.xlu0 %924
    %v926 = vrot.slane %v923, 1
    %v927 = vrot.slane %v925, 1
    %v928 = vsel %vm184, %v923, %v926
    %v929 = vsel %vm184, %v925, %v927
    %v932 = vadd.f32 %v914, %v928
    %v933 = vadd.f32 %v915, %v929
    %s934 = sld [smem:[#allocation6 + $0x44]]
    %v935 = vstv %s934
    %v936 = vmul.f32 %v75, %v935
    %v937 = vmul.f32 %v76, %v935
    %940 = vrot.lane.b32.xlu0 %v936, 126
    %v941 = vpop.permute.xlu0 %940
    %942 = vrot.lane.b32.xlu0 %v937, 126
    %v943 = vpop.permute.xlu0 %942
    %v944 = vrot.slane %v941, 1
    %v945 = vrot.slane %v943, 1
    %v946 = vsel %vm184, %v941, %v944
    %v947 = vsel %vm184, %v943, %v945
    %v950 = vadd.f32 %v932, %v946
    %v951 = vadd.f32 %v933, %v947
    %s952 = sld [smem:[#allocation6 + $0x2a]]
    %v953 = vstv %s952
    %v954 = vmul.f32 %v69, %v953
    %v955 = vmul.f32 %v70, %v953
    %s956 = sld [smem:[#allocation6 + $0x33]]
    %v957 = vstv %s956
    %v958 = vmul.f32 %v71, %v957
    %v959 = vmul.f32 %v72, %v957
    %v960 = vadd.f32 %v954, %v958
    %v961 = vadd.f32 %v955, %v959
    %s962 = sld [smem:[#allocation6 + $0x3c]]
    %v963 = vstv %s962
    %v964 = vmul.f32 %v73, %v963
    %v965 = vmul.f32 %v74, %v963
    %v966 = vadd.f32 %v960, %v964
    %v967 = vadd.f32 %v961, %v965
    %s968 = sld [smem:[#allocation6 + $0x45]]
    %v969 = vstv %s968
    %v970 = vmul.f32 %v75, %v969
    %v971 = vmul.f32 %v76, %v969
    %v972 = vadd.f32 %v966, %v970
    %v973 = vadd.f32 %v967, %v971
    %s974 = sld [smem:[#allocation6 + $0x2b]]
    %v975 = vstv %s974
    %v976 = vmul.f32 %v69, %v975
    %v977 = vmul.f32 %v70, %v975
    %980 = vrot.lane.b32.xlu0 %v976, 127
    %v981 = vpop.permute.xlu0 %980
    %982 = vrot.lane.b32.xlu0 %v977, 127
    %v983 = vpop.permute.xlu0 %982
    %v984 = vrot.slane %v981, 1
    %v985 = vrot.slane %v983, 1
    %v986 = vsel %vm111, %v981, %v984
    %v987 = vsel %vm111, %v983, %v985
    %v990 = vadd.f32 %v972, %v986
    %v991 = vadd.f32 %v973, %v987
    %s992 = sld [smem:[#allocation6 + $0x34]]
    %v993 = vstv %s992
    %v994 = vmul.f32 %v71, %v993
    %v995 = vmul.f32 %v72, %v993
    %998 = vrot.lane.b32.xlu0 %v994, 127
    %v999 = vpop.permute.xlu0 %998
    %1000 = vrot.lane.b32.xlu0 %v995, 127
    %v1001 = vpop.permute.xlu0 %1000
    %v1002 = vrot.slane %v999, 1
    %v1003 = vrot.slane %v1001, 1
    %v1004 = vsel %vm111, %v999, %v1002
    %v1005 = vsel %vm111, %v1001, %v1003
    %v1008 = vadd.f32 %v990, %v1004
    %v1009 = vadd.f32 %v991, %v1005
    %s1010 = sld [smem:[#allocation6 + $0x3d]]
    %v1011 = vstv %s1010
    %v1012 = vmul.f32 %v73, %v1011
    %v1013 = vmul.f32 %v74, %v1011
    %1016 = vrot.lane.b32.xlu0 %v1012, 127
    %v1017 = vpop.permute.xlu0 %1016
    %1018 = vrot.lane.b32.xlu0 %v1013, 127
    %v1019 = vpop.permute.xlu0 %1018
    %v1020 = vrot.slane %v1017, 1
    %v1021 = vrot.slane %v1019, 1
    %v1022 = vsel %vm111, %v1017, %v1020
    %v1023 = vsel %vm111, %v1019, %v1021
    %v1026 = vadd.f32 %v1008, %v1022
    %v1027 = vadd.f32 %v1009, %v1023
    %s1028 = sld [smem:[#allocation6 + $0x46]]
    %v1029 = vstv %s1028
    %v1030 = vmul.f32 %v75, %v1029
    %v1031 = vmul.f32 %v76, %v1029
    %1034 = vrot.lane.b32.xlu0 %v1030, 127
    %v1035 = vpop.permute.xlu0 %1034
    %1036 = vrot.lane.b32.xlu0 %v1031, 127
    %v1037 = vpop.permute.xlu0 %1036
    %v1038 = vrot.slane %v1035, 1
    %v1039 = vrot.slane %v1037, 1
    %v1040 = vsel %vm111, %v1035, %v1038
    %v1041 = vsel %vm111, %v1037, %v1039
    %v1044 = vadd.f32 %v1026, %v1040
    %v1045 = vadd.f32 %v1027, %v1041
    %s1046 = sld [smem:[#allocation6 + $0x2c]]
    %v1047 = vstv %s1046
    %v1048 = vmul.f32 %v69, %v1047
    %v1049 = vmul.f32 %v70, %v1047
    %1052 = vrot.lane.b32.xlu0 %v1048, 126
    %v1053 = vpop.permute.xlu0 %1052
    %1054 = vrot.lane.b32.xlu0 %v1049, 126
    %v1055 = vpop.permute.xlu0 %1054
    %v1056 = vrot.slane %v1053, 1
    %v1057 = vrot.slane %v1055, 1
    %v1058 = vsel %vm184, %v1053, %v1056
    %v1059 = vsel %vm184, %v1055, %v1057
    %v1062 = vadd.f32 %v1044, %v1058
    %v1063 = vadd.f32 %v1045, %v1059
    %s1064 = sld [smem:[#allocation6 + $0x35]]
    %v1065 = vstv %s1064
    %v1066 = vmul.f32 %v71, %v1065
    %v1067 = vmul.f32 %v72, %v1065
    %1070 = vrot.lane.b32.xlu0 %v1066, 126
    %v1071 = vpop.permute.xlu0 %1070
    %1072 = vrot.lane.b32.xlu0 %v1067, 126
    %v1073 = vpop.permute.xlu0 %1072
    %v1074 = vrot.slane %v1071, 1
    %v1075 = vrot.slane %v1073, 1
    %v1076 = vsel %vm184, %v1071, %v1074
    %v1077 = vsel %vm184, %v1073, %v1075
    %v1080 = vadd.f32 %v1062, %v1076
    %v1081 = vadd.f32 %v1063, %v1077
    %s1082 = sld [smem:[#allocation6 + $0x3e]]
    %v1083 = vstv %s1082
    %v1084 = vmul.f32 %v73, %v1083
    %v1085 = vmul.f32 %v74, %v1083
    %1088 = vrot.lane.b32.xlu0 %v1084, 126
    %v1089 = vpop.permute.xlu0 %1088
    %1090 = vrot.lane.b32.xlu0 %v1085, 126
    %v1091 = vpop.permute.xlu0 %1090
    %v1092 = vrot.slane %v1089, 1
    %v1093 = vrot.slane %v1091, 1
    %v1094 = vsel %vm184, %v1089, %v1092
    %v1095 = vsel %vm184, %v1091, %v1093
    %v1098 = vadd.f32 %v1080, %v1094
    %v1099 = vadd.f32 %v1081, %v1095
    %s1100 = sld [smem:[#allocation6 + $0x47]]
    %v1101 = vstv %s1100
    %v1102 = vmul.f32 %v75, %v1101
    %v1103 = vmul.f32 %v76, %v1101
    %1106 = vrot.lane.b32.xlu0 %v1102, 126
    %v1107 = vpop.permute.xlu0 %1106
    %1108 = vrot.lane.b32.xlu0 %v1103, 126
    %v1109 = vpop.permute.xlu0 %1108
    %v1110 = vrot.slane %v1107, 1
    %v1111 = vrot.slane %v1109, 1
    %v1112 = vsel %vm184, %v1107, %v1110
    %v1113 = vsel %vm184, %v1109, %v1111
    %v1116 = vadd.f32 %v1098, %v1112
    %v1117 = vadd.f32 %v1099, %v1113
    %1120 = vrot.lane.b32.xlu0 %v950, 112
    %v1121 = vpop.permute.xlu0 %1120
    %1122 = vrot.lane.b32.xlu0 %v951, 112
    %v1123 = vpop.permute.xlu0 %1122
    %v1124 = vrot.slane %v1121, 1
    %v1125 = vrot.slane %v1123, 1
    %v1126 = vsel %vm585, %v1121, %v1124
    %v1127 = vsel %vm585, %v1123, %v1125
    %v1130 = vadd.f32 %v784, %v1126
    %v1131 = vadd.f32 %v785, %v1127
    %s1132 = sld [smem:[#allocation7 + $0x1]]
    %v1133 = vstv %s1132
    %v1134 = vadd.f32 %v1116, %v1133
    %v1135 = vadd.f32 %v1117, %v1133
    %1138 = vrot.lane.b32.xlu0 %v1134, 96
    %v1139 = vpop.permute.xlu0 %1138
    %1140 = vrot.lane.b32.xlu0 %v1135, 96
    %v1141 = vpop.permute.xlu0 %1140
    %v1142 = vrot.slane %v1139, 1
    %v1143 = vrot.slane %v1141, 1
    %v1144 = vsel %vm604, %v1139, %v1142
    %v1145 = vsel %vm604, %v1141, %v1143
    %v1148 = vadd.f32 %v1130, %v1144
    %v1149 = vadd.f32 %v1131, %v1145
    %v1150 = vtanh.pop %v1148
    %v1151 = vtanh.pop %v1149
    %s1152 = scalar_lea.vmem [#allocation9], 1
    %1153 = vst.msk [vmem:[%s1152] ss:$4 sm:$0x3] %vm616, %v1150
    %s1154 = scalar_lea.vmem [#allocation9], 9
    %1155 = vst.msk [vmem:[%s1154] ss:$4 sm:$0x3] %vm616, %v1151
    %s1156 = sld [smem:[#allocation6 + $0x48]]
    %v1157 = vstv %s1156
    %v1158 = vmul.f32 %v54, %v1157
    %v1159 = vmul.f32 %v56, %v1157
    %s1160 = sld [smem:[#allocation6 + $0x51]]
    %v1161 = vstv %s1160
    %v1162 = vmul.f32 %v58, %v1161
    %v1163 = vmul.f32 %v60, %v1161
    %v1164 = vadd.f32 %v1158, %v1162
    %v1165 = vadd.f32 %v1159, %v1163
    %s1166 = sld [smem:[#allocation6 + $0x5a]]
    %v1167 = vstv %s1166
    %v1168 = vmul.f32 %v62, %v1167
    %v1169 = vmul.f32 %v64, %v1167
    %v1170 = vadd.f32 %v1164, %v1168
    %v1171 = vadd.f32 %v1165, %v1169
    %s1172 = sld [smem:[#allocation6 + $0x63]]
    %v1173 = vstv %s1172
    %v1174 = vmul.f32 %v66, %v1173
    %v1175 = vmul.f32 %v68, %v1173
    %v1176 = vadd.f32 %v1170, %v1174
    %v1177 = vadd.f32 %v1171, %v1175
    %s1178 = sld [smem:[#allocation6 + $0x49]]
    %v1179 = vstv %s1178
    %v1180 = vmul.f32 %v69, %v1179
    %v1181 = vmul.f32 %v70, %v1179
    %1184 = vrot.lane.b32.xlu0 %v1180, 127
    %v1185 = vpop.permute.xlu0 %1184
    %1186 = vrot.lane.b32.xlu0 %v1181, 127
    %v1187 = vpop.permute.xlu0 %1186
    %v1188 = vrot.slane %v1185, 1
    %v1189 = vrot.slane %v1187, 1
    %v1190 = vsel %vm111, %v1185, %v1188
    %v1191 = vsel %vm111, %v1187, %v1189
    %v1194 = vadd.f32 %v1176, %v1190
    %v1195 = vadd.f32 %v1177, %v1191
    %s1196 = sld [smem:[#allocation6 + $0x52]]
    %v1197 = vstv %s1196
    %v1198 = vmul.f32 %v71, %v1197
    %v1199 = vmul.f32 %v72, %v1197
    %1202 = vrot.lane.b32.xlu0 %v1198, 127
    %v1203 = vpop.permute.xlu0 %1202
    %1204 = vrot.lane.b32.xlu0 %v1199, 127
    %v1205 = vpop.permute.xlu0 %1204
    %v1206 = vrot.slane %v1203, 1
    %v1207 = vrot.slane %v1205, 1
    %v1208 = vsel %vm111, %v1203, %v1206
    %v1209 = vsel %vm111, %v1205, %v1207
    %v1212 = vadd.f32 %v1194, %v1208
    %v1213 = vadd.f32 %v1195, %v1209
    %s1214 = sld [smem:[#allocation6 + $0x5b]]
    %v1215 = vstv %s1214
    %v1216 = vmul.f32 %v73, %v1215
    %v1217 = vmul.f32 %v74, %v1215
    %1220 = vrot.lane.b32.xlu0 %v1216, 127
    %v1221 = vpop.permute.xlu0 %1220
    %1222 = vrot.lane.b32.xlu0 %v1217, 127
    %v1223 = vpop.permute.xlu0 %1222
    %v1224 = vrot.slane %v1221, 1
    %v1225 = vrot.slane %v1223, 1
    %v1226 = vsel %vm111, %v1221, %v1224
    %v1227 = vsel %vm111, %v1223, %v1225
    %v1230 = vadd.f32 %v1212, %v1226
    %v1231 = vadd.f32 %v1213, %v1227
    %s1232 = sld [smem:[#allocation6 + $0x64]]
    %v1233 = vstv %s1232
    %v1234 = vmul.f32 %v75, %v1233
    %v1235 = vmul.f32 %v76, %v1233
    %1238 = vrot.lane.b32.xlu0 %v1234, 127
    %v1239 = vpop.permute.xlu0 %1238
    %1240 = vrot.lane.b32.xlu0 %v1235, 127
    %v1241 = vpop.permute.xlu0 %1240
    %v1242 = vrot.slane %v1239, 1
    %v1243 = vrot.slane %v1241, 1
    %v1244 = vsel %vm111, %v1239, %v1242
    %v1245 = vsel %vm111, %v1241, %v1243
    %v1248 = vadd.f32 %v1230, %v1244
    %v1249 = vadd.f32 %v1231, %v1245
    %s1250 = sld [smem:[#allocation6 + $0x4a]]
    %v1251 = vstv %s1250
    %v1252 = vmul.f32 %v69, %v1251
    %v1253 = vmul.f32 %v70, %v1251
    %1256 = vrot.lane.b32.xlu0 %v1252, 126
    %v1257 = vpop.permute.xlu0 %1256
    %1258 = vrot.lane.b32.xlu0 %v1253, 126
    %v1259 = vpop.permute.xlu0 %1258
    %v1260 = vrot.slane %v1257, 1
    %v1261 = vrot.slane %v1259, 1
    %v1262 = vsel %vm184, %v1257, %v1260
    %v1263 = vsel %vm184, %v1259, %v1261
    %v1266 = vadd.f32 %v1248, %v1262
    %v1267 = vadd.f32 %v1249, %v1263
    %s1268 = sld [smem:[#allocation6 + $0x53]]
    %v1269 = vstv %s1268
    %v1270 = vmul.f32 %v71, %v1269
    %v1271 = vmul.f32 %v72, %v1269
    %1274 = vrot.lane.b32.xlu0 %v1270, 126
    %v1275 = vpop.permute.xlu0 %1274
    %1276 = vrot.lane.b32.xlu0 %v1271, 126
    %v1277 = vpop.permute.xlu0 %1276
    %v1278 = vrot.slane %v1275, 1
    %v1279 = vrot.slane %v1277, 1
    %v1280 = vsel %vm184, %v1275, %v1278
    %v1281 = vsel %vm184, %v1277, %v1279
    %v1284 = vadd.f32 %v1266, %v1280
    %v1285 = vadd.f32 %v1267, %v1281
    %s1286 = sld [smem:[#allocation6 + $0x5c]]
    %v1287 = vstv %s1286
    %v1288 = vmul.f32 %v73, %v1287
    %v1289 = vmul.f32 %v74, %v1287
    %1292 = vrot.lane.b32.xlu0 %v1288, 126
    %v1293 = vpop.permute.xlu0 %1292
    %1294 = vrot.lane.b32.xlu0 %v1289, 126
    %v1295 = vpop.permute.xlu0 %1294
    %v1296 = vrot.slane %v1293, 1
    %v1297 = vrot.slane %v1295, 1
    %v1298 = vsel %vm184, %v1293, %v1296
    %v1299 = vsel %vm184, %v1295, %v1297
    %v1302 = vadd.f32 %v1284, %v1298
    %v1303 = vadd.f32 %v1285, %v1299
    %s1304 = sld [smem:[#allocation6 + $0x65]]
    %v1305 = vstv %s1304
    %v1306 = vmul.f32 %v75, %v1305
    %v1307 = vmul.f32 %v76, %v1305
    %1310 = vrot.lane.b32.xlu0 %v1306, 126
    %v1311 = vpop.permute.xlu0 %1310
    %1312 = vrot.lane.b32.xlu0 %v1307, 126
    %v1313 = vpop.permute.xlu0 %1312
    %v1314 = vrot.slane %v1311, 1
    %v1315 = vrot.slane %v1313, 1
    %v1316 = vsel %vm184, %v1311, %v1314
    %v1317 = vsel %vm184, %v1313, %v1315
    %v1320 = vadd.f32 %v1302, %v1316
    %v1321 = vadd.f32 %v1303, %v1317
    %s1322 = sld [smem:[#allocation6 + $0x4b]]
    %v1323 = vstv %s1322
    %v1324 = vmul.f32 %v69, %v1323
    %v1325 = vmul.f32 %v70, %v1323
    %s1326 = sld [smem:[#allocation6 + $0x54]]
    %v1327 = vstv %s1326
    %v1328 = vmul.f32 %v71, %v1327
    %v1329 = vmul.f32 %v72, %v1327
    %v1330 = vadd.f32 %v1324, %v1328
    %v1331 = vadd.f32 %v1325, %v1329
    %s1332 = sld [smem:[#allocation6 + $0x5d]]
    %v1333 = vstv %s1332
    %v1334 = vmul.f32 %v73, %v1333
    %v1335 = vmul.f32 %v74, %v1333
    %v1336 = vadd.f32 %v1330, %v1334
    %v1337 = vadd.f32 %v1331, %v1335
    %s1338 = sld [smem:[#allocation6 + $0x66]]
    %v1339 = vstv %s1338
    %v1340 = vmul.f32 %v75, %v1339
    %v1341 = vmul.f32 %v76, %v1339
    %v1342 = vadd.f32 %v1336, %v1340
    %v1343 = vadd.f32 %v1337, %v1341
    %s1344 = sld [smem:[#allocation6 + $0x4c]]
    %v1345 = vstv %s1344
    %v1346 = vmul.f32 %v69, %v1345
    %v1347 = vmul.f32 %v70, %v1345
    %1350 = vrot.lane.b32.xlu0 %v1346, 127
    %v1351 = vpop.permute.xlu0 %1350
    %1352 = vrot.lane.b32.xlu0 %v1347, 127
    %v1353 = vpop.permute.xlu0 %1352
    %v1354 = vrot.slane %v1351, 1
    %v1355 = vrot.slane %v1353, 1
    %v1356 = vsel %vm111, %v1351, %v1354
    %v1357 = vsel %vm111, %v1353, %v1355
    %v1360 = vadd.f32 %v1342, %v1356
    %v1361 = vadd.f32 %v1343, %v1357
    %s1362 = sld [smem:[#allocation6 + $0x55]]
    %v1363 = vstv %s1362
    %v1364 = vmul.f32 %v71, %v1363
    %v1365 = vmul.f32 %v72, %v1363
    %1368 = vrot.lane.b32.xlu0 %v1364, 127
    %v1369 = vpop.permute.xlu0 %1368
    %1370 = vrot.lane.b32.xlu0 %v1365, 127
    %v1371 = vpop.permute.xlu0 %1370
    %v1372 = vrot.slane %v1369, 1
    %v1373 = vrot.slane %v1371, 1
    %v1374 = vsel %vm111, %v1369, %v1372
    %v1375 = vsel %vm111, %v1371, %v1373
    %v1378 = vadd.f32 %v1360, %v1374
    %v1379 = vadd.f32 %v1361, %v1375
    %s1380 = sld [smem:[#allocation6 + $0x5e]]
    %v1381 = vstv %s1380
    %v1382 = vmul.f32 %v73, %v1381
    %v1383 = vmul.f32 %v74, %v1381
    %1386 = vrot.lane.b32.xlu0 %v1382, 127
    %v1387 = vpop.permute.xlu0 %1386
    %1388 = vrot.lane.b32.xlu0 %v1383, 127
    %v1389 = vpop.permute.xlu0 %1388
    %v1390 = vrot.slane %v1387, 1
    %v1391 = vrot.slane %v1389, 1
    %v1392 = vsel %vm111, %v1387, %v1390
    %v1393 = vsel %vm111, %v1389, %v1391
    %v1396 = vadd.f32 %v1378, %v1392
    %v1397 = vadd.f32 %v1379, %v1393
    %s1398 = sld [smem:[#allocation6 + $0x67]]
    %v1399 = vstv %s1398
    %v1400 = vmul.f32 %v75, %v1399
    %v1401 = vmul.f32 %v76, %v1399
    %1404 = vrot.lane.b32.xlu0 %v1400, 127
    %v1405 = vpop.permute.xlu0 %1404
    %1406 = vrot.lane.b32.xlu0 %v1401, 127
    %v1407 = vpop.permute.xlu0 %1406
    %v1408 = vrot.slane %v1405, 1
    %v1409 = vrot.slane %v1407, 1
    %v1410 = vsel %vm111, %v1405, %v1408
    %v1411 = vsel %vm111, %v1407, %v1409
    %v1414 = vadd.f32 %v1396, %v1410
    %v1415 = vadd.f32 %v1397, %v1411
    %s1416 = sld [smem:[#allocation6 + $0x4d]]
    %v1417 = vstv %s1416
    %v1418 = vmul.f32 %v69, %v1417
    %v1419 = vmul.f32 %v70, %v1417
    %1422 = vrot.lane.b32.xlu0 %v1418, 126
    %v1423 = vpop.permute.xlu0 %1422
    %1424 = vrot.lane.b32.xlu0 %v1419, 126
    %v1425 = vpop.permute.xlu0 %1424
    %v1426 = vrot.slane %v1423, 1
    %v1427 = vrot.slane %v1425, 1
    %v1428 = vsel %vm184, %v1423, %v1426
    %v1429 = vsel %vm184, %v1425, %v1427
    %v1432 = vadd.f32 %v1414, %v1428
    %v1433 = vadd.f32 %v1415, %v1429
    %s1434 = sld [smem:[#allocation6 + $0x56]]
    %v1435 = vstv %s1434
    %v1436 = vmul.f32 %v71, %v1435
    %v1437 = vmul.f32 %v72, %v1435
    %1440 = vrot.lane.b32.xlu0 %v1436, 126
    %v1441 = vpop.permute.xlu0 %1440
    %1442 = vrot.lane.b32.xlu0 %v1437, 126
    %v1443 = vpop.permute.xlu0 %1442
    %v1444 = vrot.slane %v1441, 1
    %v1445 = vrot.slane %v1443, 1
    %v1446 = vsel %vm184, %v1441, %v1444
    %v1447 = vsel %vm184, %v1443, %v1445
    %v1450 = vadd.f32 %v1432, %v1446
    %v1451 = vadd.f32 %v1433, %v1447
    %s1452 = sld [smem:[#allocation6 + $0x5f]]
    %v1453 = vstv %s1452
    %v1454 = vmul.f32 %v73, %v1453
    %v1455 = vmul.f32 %v74, %v1453
    %1458 = vrot.lane.b32.xlu0 %v1454, 126
    %v1459 = vpop.permute.xlu0 %1458
    %1460 = vrot.lane.b32.xlu0 %v1455, 126
    %v1461 = vpop.permute.xlu0 %1460
    %v1462 = vrot.slane %v1459, 1
    %v1463 = vrot.slane %v1461, 1
    %v1464 = vsel %vm184, %v1459, %v1462
    %v1465 = vsel %vm184, %v1461, %v1463
    %v1468 = vadd.f32 %v1450, %v1464
    %v1469 = vadd.f32 %v1451, %v1465
    %s1470 = sld [smem:[#allocation6 + $0x68]]
    %v1471 = vstv %s1470
    %v1472 = vmul.f32 %v75, %v1471
    %v1473 = vmul.f32 %v76, %v1471
    %1476 = vrot.lane.b32.xlu0 %v1472, 126
    %v1477 = vpop.permute.xlu0 %1476
    %1478 = vrot.lane.b32.xlu0 %v1473, 126
    %v1479 = vpop.permute.xlu0 %1478
    %v1480 = vrot.slane %v1477, 1
    %v1481 = vrot.slane %v1479, 1
    %v1482 = vsel %vm184, %v1477, %v1480
    %v1483 = vsel %vm184, %v1479, %v1481
    %v1486 = vadd.f32 %v1468, %v1482
    %v1487 = vadd.f32 %v1469, %v1483
    %s1488 = sld [smem:[#allocation6 + $0x4e]]
    %v1489 = vstv %s1488
    %v1490 = vmul.f32 %v69, %v1489
    %v1491 = vmul.f32 %v70, %v1489
    %s1492 = sld [smem:[#allocation6 + $0x57]]
    %v1493 = vstv %s1492
    %v1494 = vmul.f32 %v71, %v1493
    %v1495 = vmul.f32 %v72, %v1493
    %v1496 = vadd.f32 %v1490, %v1494
    %v1497 = vadd.f32 %v1491, %v1495
    %s1498 = sld [smem:[#allocation6 + $0x60]]
    %v1499 = vstv %s1498
    %v1500 = vmul.f32 %v73, %v1499
    %v1501 = vmul.f32 %v74, %v1499
    %v1502 = vadd.f32 %v1496, %v1500
    %v1503 = vadd.f32 %v1497, %v1501
    %s1504 = sld [smem:[#allocation6 + $0x69]]
    %v1505 = vstv %s1504
    %v1506 = vmul.f32 %v75, %v1505
    %v1507 = vmul.f32 %v76, %v1505
    %v1508 = vadd.f32 %v1502, %v1506
    %v1509 = vadd.f32 %v1503, %v1507
    %s1510 = sld [smem:[#allocation6 + $0x4f]]
    %v1511 = vstv %s1510
    %v1512 = vmul.f32 %v69, %v1511
    %v1513 = vmul.f32 %v70, %v1511
    %1516 = vrot.lane.b32.xlu0 %v1512, 127
    %v1517 = vpop.permute.xlu0 %1516
    %1518 = vrot.lane.b32.xlu0 %v1513, 127
    %v1519 = vpop.permute.xlu0 %1518
    %v1520 = vrot.slane %v1517, 1
    %v1521 = vrot.slane %v1519, 1
    %v1522 = vsel %vm111, %v1517, %v1520
    %v1523 = vsel %vm111, %v1519, %v1521
    %v1526 = vadd.f32 %v1508, %v1522
    %v1527 = vadd.f32 %v1509, %v1523
    %s1528 = sld [smem:[#allocation6 + $0x58]]
    %v1529 = vstv %s1528
    %v1530 = vmul.f32 %v71, %v1529
    %v1531 = vmul.f32 %v72, %v1529
    %1534 = vrot.lane.b32.xlu0 %v1530, 127
    %v1535 = vpop.permute.xlu0 %1534
    %1536 = vrot.lane.b32.xlu0 %v1531, 127
    %v1537 = vpop.permute.xlu0 %1536
    %v1538 = vrot.slane %v1535, 1
    %v1539 = vrot.slane %v1537, 1
    %v1540 = vsel %vm111, %v1535, %v1538
    %v1541 = vsel %vm111, %v1537, %v1539
    %v1544 = vadd.f32 %v1526, %v1540
    %v1545 = vadd.f32 %v1527, %v1541
    %s1546 = sld [smem:[#allocation6 + $0x61]]
    %v1547 = vstv %s1546
    %v1548 = vmul.f32 %v73, %v1547
    %v1549 = vmul.f32 %v74, %v1547
    %1552 = vrot.lane.b32.xlu0 %v1548, 127
    %v1553 = vpop.permute.xlu0 %1552
    %1554 = vrot.lane.b32.xlu0 %v1549, 127
    %v1555 = vpop.permute.xlu0 %1554
    %v1556 = vrot.slane %v1553, 1
    %v1557 = vrot.slane %v1555, 1
    %v1558 = vsel %vm111, %v1553, %v1556
    %v1559 = vsel %vm111, %v1555, %v1557
    %v1562 = vadd.f32 %v1544, %v1558
    %v1563 = vadd.f32 %v1545, %v1559
    %s1564 = sld [smem:[#allocation6 + $0x6a]]
    %v1565 = vstv %s1564
    %v1566 = vmul.f32 %v75, %v1565
    %v1567 = vmul.f32 %v76, %v1565
    %1570 = vrot.lane.b32.xlu0 %v1566, 127
    %v1571 = vpop.permute.xlu0 %1570
    %1572 = vrot.lane.b32.xlu0 %v1567, 127
    %v1573 = vpop.permute.xlu0 %1572
    %v1574 = vrot.slane %v1571, 1
    %v1575 = vrot.slane %v1573, 1
    %v1576 = vsel %vm111, %v1571, %v1574
    %v1577 = vsel %vm111, %v1573, %v1575
    %v1580 = vadd.f32 %v1562, %v1576
    %v1581 = vadd.f32 %v1563, %v1577
    %s1582 = sld [smem:[#allocation6 + $0x50]]
    %v1583 = vstv %s1582
    %v1584 = vmul.f32 %v69, %v1583
    %v1585 = vmul.f32 %v70, %v1583
    %1588 = vrot.lane.b32.xlu0 %v1584, 126
    %v1589 = vpop.permute.xlu0 %1588
    %1590 = vrot.lane.b32.xlu0 %v1585, 126
    %v1591 = vpop.permute.xlu0 %1590
    %v1592 = vrot.slane %v1589, 1
    %v1593 = vrot.slane %v1591, 1
    %v1594 = vsel %vm184, %v1589, %v1592
    %v1595 = vsel %vm184, %v1591, %v1593
    %v1598 = vadd.f32 %v1580, %v1594
    %v1599 = vadd.f32 %v1581, %v1595
    %s1600 = sld [smem:[#allocation6 + $0x59]]
    %v1601 = vstv %s1600
    %v1602 = vmul.f32 %v71, %v1601
    %v1603 = vmul.f32 %v72, %v1601
    %1606 = vrot.lane.b32.xlu0 %v1602, 126
    %v1607 = vpop.permute.xlu0 %1606
    %1608 = vrot.lane.b32.xlu0 %v1603, 126
    %v1609 = vpop.permute.xlu0 %1608
    %v1610 = vrot.slane %v1607, 1
    %v1611 = vrot.slane %v1609, 1
    %v1612 = vsel %vm184, %v1607, %v1610
    %v1613 = vsel %vm184, %v1609, %v1611
    %v1616 = vadd.f32 %v1598, %v1612
    %v1617 = vadd.f32 %v1599, %v1613
    %s1618 = sld [smem:[#allocation6 + $0x62]]
    %v1619 = vstv %s1618
    %v1620 = vmul.f32 %v73, %v1619
    %v1621 = vmul.f32 %v74, %v1619
    %1624 = vrot.lane.b32.xlu0 %v1620, 126
    %v1625 = vpop.permute.xlu0 %1624
    %1626 = vrot.lane.b32.xlu0 %v1621, 126
    %v1627 = vpop.permute.xlu0 %1626
    %v1628 = vrot.slane %v1625, 1
    %v1629 = vrot.slane %v1627, 1
    %v1630 = vsel %vm184, %v1625, %v1628
    %v1631 = vsel %vm184, %v1627, %v1629
    %v1634 = vadd.f32 %v1616, %v1630
    %v1635 = vadd.f32 %v1617, %v1631
    %s1636 = sld [smem:[#allocation6 + $0x6b]]
    %v1637 = vstv %s1636
    %v1638 = vmul.f32 %v75, %v1637
    %v1639 = vmul.f32 %v76, %v1637
    %1642 = vrot.lane.b32.xlu0 %v1638, 126
    %v1643 = vpop.permute.xlu0 %1642
    %1644 = vrot.lane.b32.xlu0 %v1639, 126
    %v1645 = vpop.permute.xlu0 %1644
    %v1646 = vrot.slane %v1643, 1
    %v1647 = vrot.slane %v1645, 1
    %v1648 = vsel %vm184, %v1643, %v1646
    %v1649 = vsel %vm184, %v1645, %v1647
    %v1652 = vadd.f32 %v1634, %v1648
    %v1653 = vadd.f32 %v1635, %v1649
    %1656 = vrot.lane.b32.xlu0 %v1486, 112
    %v1657 = vpop.permute.xlu0 %1656
    %1658 = vrot.lane.b32.xlu0 %v1487, 112
    %v1659 = vpop.permute.xlu0 %1658
    %v1660 = vrot.slane %v1657, 1
    %v1661 = vrot.slane %v1659, 1
    %v1662 = vsel %vm585, %v1657, %v1660
    %v1663 = vsel %vm585, %v1659, %v1661
    %v1666 = vadd.f32 %v1320, %v1662
    %v1667 = vadd.f32 %v1321, %v1663
    %s1668 = sld [smem:[#allocation7 + $0x2]]
    %v1669 = vstv %s1668
    %v1670 = vadd.f32 %v1652, %v1669
    %v1671 = vadd.f32 %v1653, %v1669
    %1674 = vrot.lane.b32.xlu0 %v1670, 96
    %v1675 = vpop.permute.xlu0 %1674
    %1676 = vrot.lane.b32.xlu0 %v1671, 96
    %v1677 = vpop.permute.xlu0 %1676
    %v1678 = vrot.slane %v1675, 1
    %v1679 = vrot.slane %v1677, 1
    %v1680 = vsel %vm604, %v1675, %v1678
    %v1681 = vsel %vm604, %v1677, %v1679
    %v1684 = vadd.f32 %v1666, %v1680
    %v1685 = vadd.f32 %v1667, %v1681
    %v1686 = vtanh.pop %v1684
    %v1687 = vtanh.pop %v1685
    %s1688 = scalar_lea.vmem [#allocation9], 2
    %1689 = vst.msk [vmem:[%s1688] ss:$4 sm:$0x3] %vm616, %v1686
    %s1690 = scalar_lea.vmem [#allocation9], 10
    %1691 = vst.msk [vmem:[%s1690] ss:$4 sm:$0x3] %vm616, %v1687
    %s1692 = sld [smem:[#allocation6 + $0x6c]]
    %v1693 = vstv %s1692
    %v1694 = vmul.f32 %v54, %v1693
    %v1695 = vmul.f32 %v56, %v1693
    %s1696 = sld [smem:[#allocation6 + $0x75]]
    %v1697 = vstv %s1696
    %v1698 = vmul.f32 %v58, %v1697
    %v1699 = vmul.f32 %v60, %v1697
    %v1700 = vadd.f32 %v1694, %v1698
    %v1701 = vadd.f32 %v1695, %v1699
    %s1702 = sld [smem:[#allocation6 + $0x7e]]
    %v1703 = vstv %s1702
    %v1704 = vmul.f32 %v62, %v1703
    %v1705 = vmul.f32 %v64, %v1703
    %v1706 = vadd.f32 %v1700, %v1704
    %v1707 = vadd.f32 %v1701, %v1705
    %s1708 = sld [smem:[#allocation6 + $0x87]]
    %v1709 = vstv %s1708
    %v1710 = vmul.f32 %v66, %v1709
    %v1711 = vmul.f32 %v68, %v1709
    %v1712 = vadd.f32 %v1706, %v1710
    %v1713 = vadd.f32 %v1707, %v1711
    %s1714 = sld [smem:[#allocation6 + $0x6d]]
    %v1715 = vstv %s1714
    %v1716 = vmul.f32 %v69, %v1715
    %v1717 = vmul.f32 %v70, %v1715
    %1720 = vrot.lane.b32.xlu0 %v1716, 127
    %v1721 = vpop.permute.xlu0 %1720
    %1722 = vrot.lane.b32.xlu0 %v1717, 127
    %v1723 = vpop.permute.xlu0 %1722
    %v1724 = vrot.slane %v1721, 1
    %v1725 = vrot.slane %v1723, 1
    %v1726 = vsel %vm111, %v1721, %v1724
    %v1727 = vsel %vm111, %v1723, %v1725
    %v1730 = vadd.f32 %v1712, %v1726
    %v1731 = vadd.f32 %v1713, %v1727
    %s1732 = sld [smem:[#allocation6 + $0x76]]
    %v1733 = vstv %s1732
    %v1734 = vmul.f32 %v71, %v1733
    %v1735 = vmul.f32 %v72, %v1733
    %1738 = vrot.lane.b32.xlu0 %v1734, 127
    %v1739 = vpop.permute.xlu0 %1738
    %1740 = vrot.lane.b32.xlu0 %v1735, 127
    %v1741 = vpop.permute.xlu0 %1740
    %v1742 = vrot.slane %v1739, 1
    %v1743 = vrot.slane %v1741, 1
    %v1744 = vsel %vm111, %v1739, %v1742
    %v1745 = vsel %vm111, %v1741, %v1743
    %v1748 = vadd.f32 %v1730, %v1744
    %v1749 = vadd.f32 %v1731, %v1745
    %s1750 = sld [smem:[#allocation6 + $0x7f]]
    %v1751 = vstv %s1750
    %v1752 = vmul.f32 %v73, %v1751
    %v1753 = vmul.f32 %v74, %v1751
    %1756 = vrot.lane.b32.xlu0 %v1752, 127
    %v1757 = vpop.permute.xlu0 %1756
    %1758 = vrot.lane.b32.xlu0 %v1753, 127
    %v1759 = vpop.permute.xlu0 %1758
    %v1760 = vrot.slane %v1757, 1
    %v1761 = vrot.slane %v1759, 1
    %v1762 = vsel %vm111, %v1757, %v1760
    %v1763 = vsel %vm111, %v1759, %v1761
    %v1766 = vadd.f32 %v1748, %v1762
    %v1767 = vadd.f32 %v1749, %v1763
    %s1768 = sld [smem:[#allocation6 + $0x88]]
    %v1769 = vstv %s1768
    %v1770 = vmul.f32 %v75, %v1769
    %v1771 = vmul.f32 %v76, %v1769
    %1774 = vrot.lane.b32.xlu0 %v1770, 127
    %v1775 = vpop.permute.xlu0 %1774
    %1776 = vrot.lane.b32.xlu0 %v1771, 127
    %v1777 = vpop.permute.xlu0 %1776
    %v1778 = vrot.slane %v1775, 1
    %v1779 = vrot.slane %v1777, 1
    %v1780 = vsel %vm111, %v1775, %v1778
    %v1781 = vsel %vm111, %v1777, %v1779
    %v1784 = vadd.f32 %v1766, %v1780
    %v1785 = vadd.f32 %v1767, %v1781
    %s1786 = sld [smem:[#allocation6 + $0x6e]]
    %v1787 = vstv %s1786
    %v1788 = vmul.f32 %v69, %v1787
    %v1789 = vmul.f32 %v70, %v1787
    %1792 = vrot.lane.b32.xlu0 %v1788, 126
    %v1793 = vpop.permute.xlu0 %1792
    %1794 = vrot.lane.b32.xlu0 %v1789, 126
    %v1795 = vpop.permute.xlu0 %1794
    %v1796 = vrot.slane %v1793, 1
    %v1797 = vrot.slane %v1795, 1
    %v1798 = vsel %vm184, %v1793, %v1796
    %v1799 = vsel %vm184, %v1795, %v1797
    %v1802 = vadd.f32 %v1784, %v1798
    %v1803 = vadd.f32 %v1785, %v1799
    %s1804 = sld [smem:[#allocation6 + $0x77]]
    %v1805 = vstv %s1804
    %v1806 = vmul.f32 %v71, %v1805
    %v1807 = vmul.f32 %v72, %v1805
    %1810 = vrot.lane.b32.xlu0 %v1806, 126
    %v1811 = vpop.permute.xlu0 %1810
    %1812 = vrot.lane.b32.xlu0 %v1807, 126
    %v1813 = vpop.permute.xlu0 %1812
    %v1814 = vrot.slane %v1811, 1
    %v1815 = vrot.slane %v1813, 1
    %v1816 = vsel %vm184, %v1811, %v1814
    %v1817 = vsel %vm184, %v1813, %v1815
    %v1820 = vadd.f32 %v1802, %v1816
    %v1821 = vadd.f32 %v1803, %v1817
    %s1822 = sld [smem:[#allocation6 + $0x80]]
    %v1823 = vstv %s1822
    %v1824 = vmul.f32 %v73, %v1823
    %v1825 = vmul.f32 %v74, %v1823
    %1828 = vrot.lane.b32.xlu0 %v1824, 126
    %v1829 = vpop.permute.xlu0 %1828
    %1830 = vrot.lane.b32.xlu0 %v1825, 126
    %v1831 = vpop.permute.xlu0 %1830
    %v1832 = vrot.slane %v1829, 1
    %v1833 = vrot.slane %v1831, 1
    %v1834 = vsel %vm184, %v1829, %v1832
    %v1835 = vsel %vm184, %v1831, %v1833
    %v1838 = vadd.f32 %v1820, %v1834
    %v1839 = vadd.f32 %v1821, %v1835
    %s1840 = sld [smem:[#allocation6 + $0x89]]
    %v1841 = vstv %s1840
    %v1842 = vmul.f32 %v75, %v1841
    %v1843 = vmul.f32 %v76, %v1841
    %1846 = vrot.lane.b32.xlu0 %v1842, 126
    %v1847 = vpop.permute.xlu0 %1846
    %1848 = vrot.lane.b32.xlu0 %v1843, 126
    %v1849 = vpop.permute.xlu0 %1848
    %v1850 = vrot.slane %v1847, 1
    %v1851 = vrot.slane %v1849, 1
    %v1852 = vsel %vm184, %v1847, %v1850
    %v1853 = vsel %vm184, %v1849, %v1851
    %v1856 = vadd.f32 %v1838, %v1852
    %v1857 = vadd.f32 %v1839, %v1853
    %s1858 = sld [smem:[#allocation6 + $0x6f]]
    %v1859 = vstv %s1858
    %v1860 = vmul.f32 %v69, %v1859
    %v1861 = vmul.f32 %v70, %v1859
    %s1862 = sld [smem:[#allocation6 + $0x78]]
    %v1863 = vstv %s1862
    %v1864 = vmul.f32 %v71, %v1863
    %v1865 = vmul.f32 %v72, %v1863
    %v1866 = vadd.f32 %v1860, %v1864
    %v1867 = vadd.f32 %v1861, %v1865
    %s1868 = sld [smem:[#allocation6 + $0x81]]
    %v1869 = vstv %s1868
    %v1870 = vmul.f32 %v73, %v1869
    %v1871 = vmul.f32 %v74, %v1869
    %v1872 = vadd.f32 %v1866, %v1870
    %v1873 = vadd.f32 %v1867, %v1871
    %s1874 = sld [smem:[#allocation6 + $0x8a]]
    %v1875 = vstv %s1874
    %v1876 = vmul.f32 %v75, %v1875
    %v1877 = vmul.f32 %v76, %v1875
    %v1878 = vadd.f32 %v1872, %v1876
    %v1879 = vadd.f32 %v1873, %v1877
    %s1880 = sld [smem:[#allocation6 + $0x70]]
    %v1881 = vstv %s1880
    %v1882 = vmul.f32 %v69, %v1881
    %v1883 = vmul.f32 %v70, %v1881
    %1886 = vrot.lane.b32.xlu0 %v1882, 127
    %v1887 = vpop.permute.xlu0 %1886
    %1888 = vrot.lane.b32.xlu0 %v1883, 127
    %v1889 = vpop.permute.xlu0 %1888
    %v1890 = vrot.slane %v1887, 1
    %v1891 = vrot.slane %v1889, 1
    %v1892 = vsel %vm111, %v1887, %v1890
    %v1893 = vsel %vm111, %v1889, %v1891
    %v1896 = vadd.f32 %v1878, %v1892
    %v1897 = vadd.f32 %v1879, %v1893
    %s1898 = sld [smem:[#allocation6 + $0x79]]
    %v1899 = vstv %s1898
    %v1900 = vmul.f32 %v71, %v1899
    %v1901 = vmul.f32 %v72, %v1899
    %1904 = vrot.lane.b32.xlu0 %v1900, 127
    %v1905 = vpop.permute.xlu0 %1904
    %1906 = vrot.lane.b32.xlu0 %v1901, 127
    %v1907 = vpop.permute.xlu0 %1906
    %v1908 = vrot.slane %v1905, 1
    %v1909 = vrot.slane %v1907, 1
    %v1910 = vsel %vm111, %v1905, %v1908
    %v1911 = vsel %vm111, %v1907, %v1909
    %v1914 = vadd.f32 %v1896, %v1910
    %v1915 = vadd.f32 %v1897, %v1911
    %s1916 = sld [smem:[#allocation6 + $0x82]]
    %v1917 = vstv %s1916
    %v1918 = vmul.f32 %v73, %v1917
    %v1919 = vmul.f32 %v74, %v1917
    %1922 = vrot.lane.b32.xlu0 %v1918, 127
    %v1923 = vpop.permute.xlu0 %1922
    %1924 = vrot.lane.b32.xlu0 %v1919, 127
    %v1925 = vpop.permute.xlu0 %1924
    %v1926 = vrot.slane %v1923, 1
    %v1927 = vrot.slane %v1925, 1
    %v1928 = vsel %vm111, %v1923, %v1926
    %v1929 = vsel %vm111, %v1925, %v1927
    %v1932 = vadd.f32 %v1914, %v1928
    %v1933 = vadd.f32 %v1915, %v1929
    %s1934 = sld [smem:[#allocation6 + $0x8b]]
    %v1935 = vstv %s1934
    %v1936 = vmul.f32 %v75, %v1935
    %v1937 = vmul.f32 %v76, %v1935
    %1940 = vrot.lane.b32.xlu0 %v1936, 127
    %v1941 = vpop.permute.xlu0 %1940
    %1942 = vrot.lane.b32.xlu0 %v1937, 127
    %v1943 = vpop.permute.xlu0 %1942
    %v1944 = vrot.slane %v1941, 1
    %v1945 = vrot.slane %v1943, 1
    %v1946 = vsel %vm111, %v1941, %v1944
    %v1947 = vsel %vm111, %v1943, %v1945
    %v1950 = vadd.f32 %v1932, %v1946
    %v1951 = vadd.f32 %v1933, %v1947
    %s1952 = sld [smem:[#allocation6 + $0x71]]
    %v1953 = vstv %s1952
    %v1954 = vmul.f32 %v69, %v1953
    %v1955 = vmul.f32 %v70, %v1953
    %1958 = vrot.lane.b32.xlu0 %v1954, 126
    %v1959 = vpop.permute.xlu0 %1958
    %1960 = vrot.lane.b32.xlu0 %v1955, 126
    %v1961 = vpop.permute.xlu0 %1960
    %v1962 = vrot.slane %v1959, 1
    %v1963 = vrot.slane %v1961, 1
    %v1964 = vsel %vm184, %v1959, %v1962
    %v1965 = vsel %vm184, %v1961, %v1963
    %v1968 = vadd.f32 %v1950, %v1964
    %v1969 = vadd.f32 %v1951, %v1965
    %s1970 = sld [smem:[#allocation6 + $0x7a]]
    %v1971 = vstv %s1970
    %v1972 = vmul.f32 %v71, %v1971
    %v1973 = vmul.f32 %v72, %v1971
    %1976 = vrot.lane.b32.xlu0 %v1972, 126
    %v1977 = vpop.permute.xlu0 %1976
    %1978 = vrot.lane.b32.xlu0 %v1973, 126
    %v1979 = vpop.permute.xlu0 %1978
    %v1980 = vrot.slane %v1977, 1
    %v1981 = vrot.slane %v1979, 1
    %v1982 = vsel %vm184, %v1977, %v1980
    %v1983 = vsel %vm184, %v1979, %v1981
    %v1986 = vadd.f32 %v1968, %v1982
    %v1987 = vadd.f32 %v1969, %v1983
    %s1988 = sld [smem:[#allocation6 + $0x83]]
    %v1989 = vstv %s1988
    %v1990 = vmul.f32 %v73, %v1989
    %v1991 = vmul.f32 %v74, %v1989
    %1994 = vrot.lane.b32.xlu0 %v1990, 126
    %v1995 = vpop.permute.xlu0 %1994
    %1996 = vrot.lane.b32.xlu0 %v1991, 126
    %v1997 = vpop.permute.xlu0 %1996
    %v1998 = vrot.slane %v1995, 1
    %v1999 = vrot.slane %v1997, 1
    %v2000 = vsel %vm184, %v1995, %v1998
    %v2001 = vsel %vm184, %v1997, %v1999
    %v2004 = vadd.f32 %v1986, %v2000
    %v2005 = vadd.f32 %v1987, %v2001
    %s2006 = sld [smem:[#allocation6 + $0x8c]]
    %v2007 = vstv %s2006
    %v2008 = vmul.f32 %v75, %v2007
    %v2009 = vmul.f32 %v76, %v2007
    %2012 = vrot.lane.b32.xlu0 %v2008, 126
    %v2013 = vpop.permute.xlu0 %2012
    %2014 = vrot.lane.b32.xlu0 %v2009, 126
    %v2015 = vpop.permute.xlu0 %2014
    %v2016 = vrot.slane %v2013, 1
    %v2017 = vrot.slane %v2015, 1
    %v2018 = vsel %vm184, %v2013, %v2016
    %v2019 = vsel %vm184, %v2015, %v2017
    %v2022 = vadd.f32 %v2004, %v2018
    %v2023 = vadd.f32 %v2005, %v2019
    %s2024 = sld [smem:[#allocation6 + $0x72]]
    %v2025 = vstv %s2024
    %v2026 = vmul.f32 %v69, %v2025
    %v2027 = vmul.f32 %v70, %v2025
    %s2028 = sld [smem:[#allocation6 + $0x7b]]
    %v2029 = vstv %s2028
    %v2030 = vmul.f32 %v71, %v2029
    %v2031 = vmul.f32 %v72, %v2029
    %v2032 = vadd.f32 %v2026, %v2030
    %v2033 = vadd.f32 %v2027, %v2031
    %s2034 = sld [smem:[#allocation6 + $0x84]]
    %v2035 = vstv %s2034
    %v2036 = vmul.f32 %v73, %v2035
    %v2037 = vmul.f32 %v74, %v2035
    %v2038 = vadd.f32 %v2032, %v2036
    %v2039 = vadd.f32 %v2033, %v2037
    %s2040 = sld [smem:[#allocation6 + $0x8d]]
    %v2041 = vstv %s2040
    %v2042 = vmul.f32 %v75, %v2041
    %v2043 = vmul.f32 %v76, %v2041
    %v2044 = vadd.f32 %v2038, %v2042
    %v2045 = vadd.f32 %v2039, %v2043
    %s2046 = sld [smem:[#allocation6 + $0x73]]
    %v2047 = vstv %s2046
    %v2048 = vmul.f32 %v69, %v2047
    %v2049 = vmul.f32 %v70, %v2047
    %2052 = vrot.lane.b32.xlu0 %v2048, 127
    %v2053 = vpop.permute.xlu0 %2052
    %2054 = vrot.lane.b32.xlu0 %v2049, 127
    %v2055 = vpop.permute.xlu0 %2054
    %v2056 = vrot.slane %v2053, 1
    %v2057 = vrot.slane %v2055, 1
    %v2058 = vsel %vm111, %v2053, %v2056
    %v2059 = vsel %vm111, %v2055, %v2057
    %v2062 = vadd.f32 %v2044, %v2058
    %v2063 = vadd.f32 %v2045, %v2059
    %s2064 = sld [smem:[#allocation6 + $0x7c]]
    %v2065 = vstv %s2064
    %v2066 = vmul.f32 %v71, %v2065
    %v2067 = vmul.f32 %v72, %v2065
    %2070 = vrot.lane.b32.xlu0 %v2066, 127
    %v2071 = vpop.permute.xlu0 %2070
    %2072 = vrot.lane.b32.xlu0 %v2067, 127
    %v2073 = vpop.permute.xlu0 %2072
    %v2074 = vrot.slane %v2071, 1
    %v2075 = vrot.slane %v2073, 1
    %v2076 = vsel %vm111, %v2071, %v2074
    %v2077 = vsel %vm111, %v2073, %v2075
    %v2080 = vadd.f32 %v2062, %v2076
    %v2081 = vadd.f32 %v2063, %v2077
    %s2082 = sld [smem:[#allocation6 + $0x85]]
    %v2083 = vstv %s2082
    %v2084 = vmul.f32 %v73, %v2083
    %v2085 = vmul.f32 %v74, %v2083
    %2088 = vrot.lane.b32.xlu0 %v2084, 127
    %v2089 = vpop.permute.xlu0 %2088
    %2090 = vrot.lane.b32.xlu0 %v2085, 127
    %v2091 = vpop.permute.xlu0 %2090
    %v2092 = vrot.slane %v2089, 1
    %v2093 = vrot.slane %v2091, 1
    %v2094 = vsel %vm111, %v2089, %v2092
    %v2095 = vsel %vm111, %v2091, %v2093
    %v2098 = vadd.f32 %v2080, %v2094
    %v2099 = vadd.f32 %v2081, %v2095
    %s2100 = sld [smem:[#allocation6 + $0x8e]]
    %v2101 = vstv %s2100
    %v2102 = vmul.f32 %v75, %v2101
    %v2103 = vmul.f32 %v76, %v2101
    %2106 = vrot.lane.b32.xlu0 %v2102, 127
    %v2107 = vpop.permute.xlu0 %2106
    %2108 = vrot.lane.b32.xlu0 %v2103, 127
    %v2109 = vpop.permute.xlu0 %2108
    %v2110 = vrot.slane %v2107, 1
    %v2111 = vrot.slane %v2109, 1
    %v2112 = vsel %vm111, %v2107, %v2110
    %v2113 = vsel %vm111, %v2109, %v2111
    %v2116 = vadd.f32 %v2098, %v2112
    %v2117 = vadd.f32 %v2099, %v2113
    %s2118 = sld [smem:[#allocation6 + $0x74]]
    %v2119 = vstv %s2118
    %v2120 = vmul.f32 %v69, %v2119
    %v2121 = vmul.f32 %v70, %v2119
    %2124 = vrot.lane.b32.xlu0 %v2120, 126
    %v2125 = vpop.permute.xlu0 %2124
    %2126 = vrot.lane.b32.xlu0 %v2121, 126
    %v2127 = vpop.permute.xlu0 %2126
    %v2128 = vrot.slane %v2125, 1
    %v2129 = vrot.slane %v2127, 1
    %v2130 = vsel %vm184, %v2125, %v2128
    %v2131 = vsel %vm184, %v2127, %v2129
    %v2134 = vadd.f32 %v2116, %v2130
    %v2135 = vadd.f32 %v2117, %v2131
    %s2136 = sld [smem:[#allocation6 + $0x7d]]
    %v2137 = vstv %s2136
    %v2138 = vmul.f32 %v71, %v2137
    %v2139 = vmul.f32 %v72, %v2137
    %2142 = vrot.lane.b32.xlu0 %v2138, 126
    %v2143 = vpop.permute.xlu0 %2142
    %2144 = vrot.lane.b32.xlu0 %v2139, 126
    %v2145 = vpop.permute.xlu0 %2144
    %v2146 = vrot.slane %v2143, 1
    %v2147 = vrot.slane %v2145, 1
    %v2148 = vsel %vm184, %v2143, %v2146
    %v2149 = vsel %vm184, %v2145, %v2147
    %v2152 = vadd.f32 %v2134, %v2148
    %v2153 = vadd.f32 %v2135, %v2149
    %s2154 = sld [smem:[#allocation6 + $0x86]]
    %v2155 = vstv %s2154
    %v2156 = vmul.f32 %v73, %v2155
    %v2157 = vmul.f32 %v74, %v2155
    %2160 = vrot.lane.b32.xlu0 %v2156, 126
    %v2161 = vpop.permute.xlu0 %2160
    %2162 = vrot.lane.b32.xlu0 %v2157, 126
    %v2163 = vpop.permute.xlu0 %2162
    %v2164 = vrot.slane %v2161, 1
    %v2165 = vrot.slane %v2163, 1
    %v2166 = vsel %vm184, %v2161, %v2164
    %v2167 = vsel %vm184, %v2163, %v2165
    %v2170 = vadd.f32 %v2152, %v2166
    %v2171 = vadd.f32 %v2153, %v2167
    %s2172 = sld [smem:[#allocation6 + $0x8f]]
    %v2173 = vstv %s2172
    %v2174 = vmul.f32 %v75, %v2173
    %v2175 = vmul.f32 %v76, %v2173
    %2178 = vrot.lane.b32.xlu0 %v2174, 126
    %v2179 = vpop.permute.xlu0 %2178
    %2180 = vrot.lane.b32.xlu0 %v2175, 126
    %v2181 = vpop.permute.xlu0 %2180
    %v2182 = vrot.slane %v2179, 1
    %v2183 = vrot.slane %v2181, 1
    %v2184 = vsel %vm184, %v2179, %v2182
    %v2185 = vsel %vm184, %v2181, %v2183
    %v2188 = vadd.f32 %v2170, %v2184
    %v2189 = vadd.f32 %v2171, %v2185
    %2192 = vrot.lane.b32.xlu0 %v2022, 112
    %v2193 = vpop.permute.xlu0 %2192
    %2194 = vrot.lane.b32.xlu0 %v2023, 112
    %v2195 = vpop.permute.xlu0 %2194
    %v2196 = vrot.slane %v2193, 1
    %v2197 = vrot.slane %v2195, 1
    %v2198 = vsel %vm585, %v2193, %v2196
    %v2199 = vsel %vm585, %v2195, %v2197
    %v2202 = vadd.f32 %v1856, %v2198
    %v2203 = vadd.f32 %v1857, %v2199
    %s2204 = sld [smem:[#allocation7 + $0x3]]
    %v2205 = vstv %s2204
    %v2206 = vadd.f32 %v2188, %v2205
    %v2207 = vadd.f32 %v2189, %v2205
    %2210 = vrot.lane.b32.xlu0 %v2206, 96
    %v2211 = vpop.permute.xlu0 %2210
    %2212 = vrot.lane.b32.xlu0 %v2207, 96
    %v2213 = vpop.permute.xlu0 %2212
    %v2214 = vrot.slane %v2211, 1
    %v2215 = vrot.slane %v2213, 1
    %v2216 = vsel %vm604, %v2211, %v2214
    %v2217 = vsel %vm604, %v2213, %v2215
    %v2220 = vadd.f32 %v2202, %v2216
    %v2221 = vadd.f32 %v2203, %v2217
    %v2222 = vtanh.pop %v2220
    %v2223 = vtanh.pop %v2221
    %s2224 = scalar_lea.vmem [#allocation9], 3
    %2225 = vst.msk [vmem:[%s2224] ss:$4 sm:$0x3] %vm616, %v2222
    %s2226 = scalar_lea.vmem [#allocation9], 11
    %2227 = vst.msk [vmem:[%s2226] ss:$4 sm:$0x3] %vm616, %v2223
    // Predicated region
    $region26: #{tpu_custom_call.1} parent=1 // pred_check
      _
    $region27: #{tpu_custom_call.1} parent=1 // pred_check_branch
      %2229 = sbr.rel (0) target = $region29
    $region28: #{tpu_custom_call.1} parent=1 // pred_region
      %s2231 = ssub.s32 256, 256
      %2232 = vsyncadd [#allocation4], %s2231
      %s2233 = sshll.u32 [#allocation9], 4
      %s2234 = int_to_ptr.vmem [resolvable:$true] %s2233
      %2239 = dma.vmem_to_hbm [thread:$0]  %s2234, 256, %s3, [#allocation4], 128, 128, 8
    $region29: #{tpu_custom_call.1} parent=1 // pred_fallthru
      _
    // Predicated region
    $region30: #{tpu_custom_call.1} parent=1 // pred_check
      _
    $region31: #{tpu_custom_call.1} parent=1 // pred_check_branch
      %2241 = sbr.rel (0) target = $region33
    $region32: #{tpu_custom_call.1} parent=1 // pred_region
      %2242 = dma.done [#allocation4], 256
    $region33: #{tpu_custom_call.1} parent=1 // pred_fallthru
      _
    %2243 = vsyncpa [#allocation3], 1
    %2244 = vsyncpa [#allocation4], 1
    %2245 = vsyncpa [#allocation5], 1
    %2246 = vsyncpa [#allocation8], 1

</llo_original>
